<compile_context>
chip_gen: v5e
topology: v5e:2x2
jax: 0.10.0
libtpu: 0.0.40
codegen_flags: <defaults>
</compile_context>

<pallas_src>
import math
import functools

import jax
import jax.numpy as jnp
from jax import lax
from jax.experimental import pallas as pl
from jax.experimental.pallas import tpu as pltpu


# ------------------------- in-kernel math helpers -------------------------

def _erf(x):
    # Abramowitz & Stegun 7.1.26 (|err| < 1.5e-7): matches torch's exact-erf
    # GELU to f32 precision using only exp/mul/add.
    p = 0.3275911
    a1, a2, a3, a4, a5 = (0.254829592, -0.284496736, 1.421413741,
                          -1.453152027, 1.061405429)
    ax = jnp.abs(x)
    t = 1.0 / (1.0 + p * ax)
    poly = ((((a5 * t + a4) * t + a3) * t + a2) * t + a1) * t
    y = 1.0 - poly * jnp.exp(-(ax * ax))
    return jnp.where(x >= 0, y, -y)


def _gelu(x):
    # nn.GELU() default = exact erf formulation (kept in f32 for v5e portability).
    return 0.5 * x * (1.0 + _erf(x * (1.0 / math.sqrt(2.0))))


def _layernorm(x, w, b, eps=1e-5):
    # x: (M, D), w/b: (1, D); torch.nn.LayerNorm (biased variance, eps=1e-5).
    mu = jnp.mean(x, axis=-1, keepdims=True)
    xc = x - mu
    var = jnp.mean(xc * xc, axis=-1, keepdims=True)
    return xc * lax.rsqrt(var + eps) * w + b


# ------------------------------ Pallas kernel ------------------------------

def vit_layer_kernel(x_ref, mbias_ref,
                     ln1w_ref, ln1b_ref, qkvw_ref, qkvb_ref, ow_ref, ob_ref,
                     ln2w_ref, ln2b_ref, f1w_ref, f1b_ref, f2w_ref, f2b_ref,
                     lnfw_ref, lnfb_ref,
                     o_ref, *, num_heads):
    """grid=(batch, depth): one grid step = one transformer Block applied to one
    sample's (N, D) token slab; the running residual stream lives in o_ref."""
    d = pl.program_id(1)
    depth = pl.num_programs(1)

    N, D = o_ref.shape
    H = num_heads
    hd = D // H
    scale = 1.0 / math.sqrt(hd)

    @pl.when(d == 0)
    def _():
        o_ref[...] = x_ref[...]          # init residual stream from input tokens

    xf = o_ref[...]                      # (N, D) f32 residual stream

    # ---------------- Multi-head self-attention (pre-norm) ----------------
    h = _layernorm(xf, ln1w_ref[0], ln1b_ref[0]).astype(jnp.bfloat16)
    qkv = jnp.dot(h, qkvw_ref[0], preferred_element_type=jnp.float32) + qkvb_ref[0]  # (N, 3D)

    q = qkv[:, :D] * scale               # fold 1/sqrt(hd) into q (saves a VPU mul on scores)
    k = qkv[:, D:2 * D]
    v = qkv[:, 2 * D:]

    def split_heads(t):                  # (N, D) -> (H, N, hd) head-major
        return jnp.stack([t[:, i * hd:(i + 1) * hd] for i in range(H)], axis=0)

    q3 = split_heads(q).astype(jnp.bfloat16)
    k3 = split_heads(k).astype(jnp.bfloat16)
    v3 = split_heads(v).astype(jnp.bfloat16)

    # batched MXU matmuls over heads (no per-(b,h) Python-loop matmuls)
    s = jnp.einsum("hnd,hmd->hnm", q3, k3,
                   preferred_element_type=jnp.float32)            # (H, N, N) f32
    s = s + mbias_ref[...]               # key_padding bias, (1, 1, N) broadcast
    s = s - jnp.max(s, axis=-1, keepdims=True)
    e = jnp.exp(s)
    p = e * pl.reciprocal(jnp.sum(e, axis=-1, keepdims=True), approx=True)
    ctx3 = jnp.einsum("hnm,hmd->hnd", p.astype(jnp.bfloat16), v3,
                      preferred_element_type=jnp.float32)         # (H, N, hd)
    ctx = jnp.concatenate([ctx3[i] for i in range(H)], axis=-1)   # (N, D)

    y = jnp.dot(ctx.astype(jnp.bfloat16), ow_ref[0],
                preferred_element_type=jnp.float32) + ob_ref[0]
    xf = xf + y                          # residual; DropPath = identity (eval / p=0)

    # ------------------------------ MLP ------------------------------------
    h2 = _layernorm(xf, ln2w_ref[0], ln2b_ref[0]).astype(jnp.bfloat16)
    m = jnp.dot(h2, f1w_ref[0], preferred_element_type=jnp.float32) + f1b_ref[0]
    m = _gelu(m).astype(jnp.bfloat16)
    m2 = jnp.dot(m, f2w_ref[0], preferred_element_type=jnp.float32) + f2b_ref[0]
    xf = xf + m2                         # residual; DropPath = identity

    @pl.when(d < depth - 1)
    def _():
        o_ref[...] = xf                  # carry residual stream to next layer

    @pl.when(d == depth - 1)
    def _():
        # final LayerNorm applied to all tokens; wrapper extracts the cls row
        o_ref[...] = _layernorm(xf, lnfw_ref[...], lnfb_ref[...])


# ------------------------------ wrapper / glue ------------------------------

def init_params(key, depth, dim, num_heads, mlp_ratio=4.0):
    del num_heads
    Hm = int(dim * mlp_ratio)
    ks = jax.random.split(key, 5)
    std = 0.02   # trunc_normal(std=0.02) approximated with normal*std (synthetic weights)
    f32, bf16 = jnp.float32, jnp.bfloat16
    # Large streamed weights: pre-transposed (contraction dim first) + bf16.
    return dict(
        cls_token=(jax.random.normal(ks[0], (1, 1, dim), f32) * std),
        ln1_w=jnp.ones((depth, 1, dim), f32),  ln1_b=jnp.zeros((depth, 1, dim), f32),
        qkv_w=(jax.random.normal(ks[1], (depth, dim, 3 * dim), f32) * std).astype(bf16),
        qkv_b=jnp.zeros((depth, 1, 3 * dim), f32),
        out_w=(jax.random.normal(ks[2], (depth, dim, dim), f32) * std).astype(bf16),
        out_b=jnp.zeros((depth, 1, dim), f32),
        ln2_w=jnp.ones((depth, 1, dim), f32),  ln2_b=jnp.zeros((depth, 1, dim), f32),
        fc1_w=(jax.random.normal(ks[3], (depth, dim, Hm), f32) * std).astype(bf16),
        fc1_b=jnp.zeros((depth, 1, Hm), f32),
        fc2_w=(jax.random.normal(ks[4], (depth, Hm, dim), f32) * std).astype(bf16),
        fc2_b=jnp.zeros((depth, 1, dim), f32),
        lnf_w=jnp.ones((1, dim), f32),         lnf_b=jnp.zeros((1, dim), f32),
    )


def vit_forward(params, x_tokens, mask, num_heads):
    """x_tokens: (B, L, D) f32; mask: (B, L+1) bool key_padding_mask or None.
    Returns (B, D) = normalized cls token, matching VisionTransformer.forward."""
    B, L, D = x_tokens.shape
    N = L + 1
    depth = params["ln1_w"].shape[0]
    Hm = params["fc1_w"].shape[2]

    # lane/sublane-dense layout requirements of this kernel
    assert D % 128 == 0, "pad embed dim to a multiple of 128 (lane-dense slab)"
    assert N % 8 == 0, "pad tokens so cls+tokens is a multiple of 8 (sublane)"
    assert D % num_heads == 0

    # prepare_tokens: prepend cls token (pos_drop is Dropout(p=0) => identity)
    cls = jnp.broadcast_to(params["cls_token"].astype(jnp.float32), (B, 1, D))
    x = jnp.concatenate([cls, x_tokens.astype(jnp.float32)], axis=1)   # (B, N, D)
    x2d = x.reshape(B * N, D)

    if mask is None:
        mask_bias = jnp.zeros((B, 1, N), jnp.float32)
    else:
        # -1e9 (not -1e30): large enough for f32 softmax, safe if scores go bf16.
        mask_bias = jnp.where(mask, -1e9, 0.0).astype(jnp.float32).reshape(B, 1, N)

    kernel = functools.partial(vit_layer_kernel, num_heads=num_heads)

    def per_layer(shape):
        nd = len(shape)
        return pl.BlockSpec((1,) + shape[1:], lambda b, d, nd=nd: (d,) + (0,) * (nd - 1))

    in_specs = [
        pl.BlockSpec((N, D), lambda b, d: (b, 0)),        # tokens for sample b
        pl.BlockSpec((1, 1, N), lambda b, d: (b, 0, 0)),  # key-padding bias
        per_layer((depth, 1, D)),                         # ln1_w
        per_layer((depth, 1, D)),                         # ln1_b
        per_layer((depth, D, 3 * D)),                     # qkv weight (pre-transposed, bf16)
        per_layer((depth, 1, 3 * D)),                     # qkv bias
        per_layer((depth, D, D)),                         # out_proj weight (bf16)
        per_layer((depth, 1, D)),                         # out_proj bias
        per_layer((depth, 1, D)),                         # ln2_w
        per_layer((depth, 1, D)),                         # ln2_b
        per_layer((depth, D, Hm)),                        # fc1 weight (bf16)
        per_layer((depth, 1, Hm)),                        # fc1 bias
        per_layer((depth, Hm, D)),                        # fc2 weight (bf16)
        per_layer((depth, 1, D)),                         # fc2 bias
        pl.BlockSpec((1, D), lambda b, d: (0, 0)),        # final norm weight
        pl.BlockSpec((1, D), lambda b, d: (0, 0)),        # final norm bias
    ]

    out = pl.pallas_call(
        kernel,
        out_shape=jax.ShapeDtypeStruct((B * N, D), jnp.float32),
        grid_spec=pltpu.PrefetchScalarGridSpec(
            num_scalar_prefetch=0,
            grid=(B, depth),
            in_specs=in_specs,
            out_specs=pl.BlockSpec((N, D), lambda b, d: (b, 0)),
        ),
        compiler_params=pltpu.CompilerParams(
            dimension_semantics=("parallel", "arbitrary"),
            # above the 16/32 MiB default scoped limits, below v7x 64 MiB physical
            vmem_limit_bytes=48 * 1024 * 1024,
        ),
    )(x2d, mask_bias,
      params["ln1_w"], params["ln1_b"], params["qkv_w"], params["qkv_b"],
      params["out_w"], params["out_b"], params["ln2_w"], params["ln2_b"],
      params["fc1_w"], params["fc1_b"], params["fc2_w"], params["fc2_b"],
      params["lnf_w"], params["lnf_b"])

    return out.reshape(B, N, D)[:, 0]                     # x[:, 0]


if __name__ == "__main__":
    # small but lane-dense shapes: B=2, seq N=8 (7 tokens + cls), D=128, 4 heads
    B, L, D, heads, depth = 2, 7, 128, 4, 2
    key = jax.random.PRNGKey(0)
    kx, kp = jax.random.split(key)

    params = init_params(kp, depth=depth, dim=D, num_heads=heads)
    x = jax.random.normal(kx, (B, L, D), jnp.float32)

    # key_padding_mask over [cls]+tokens: pad out the last two tokens of sample 1
    mask = jnp.zeros((B, L + 1), dtype=bool)
    mask = mask.at[1, -2:].set(True)

    out = vit_forward(params, x, mask, num_heads=heads)
    out = jax.block_until_ready(out)

    assert out.shape == (B, D), out.shape
    assert bool(jnp.all(jnp.isfinite(out)))
    print("KERNEL_OK")
</pallas_src>

<mosaic_0001>
module attributes {stable_mosaic.version = 11 : i64} {
  func.func @vit_layer_kernel(%arg0: i32, %arg1: i32, %arg2: memref<8x128xf32, #tpu.memory_space<vmem>>, %arg3: memref<1x1x8xf32, #tpu.memory_space<vmem>>, %arg4: memref<1x1x128xf32, #tpu.memory_space<vmem>>, %arg5: memref<1x1x128xf32, #tpu.memory_space<vmem>>, %arg6: memref<1x128x384xbf16, #tpu.memory_space<vmem>>, %arg7: memref<1x1x384xf32, #tpu.memory_space<vmem>>, %arg8: memref<1x128x128xbf16, #tpu.memory_space<vmem>>, %arg9: memref<1x1x128xf32, #tpu.memory_space<vmem>>, %arg10: memref<1x1x128xf32, #tpu.memory_space<vmem>>, %arg11: memref<1x1x128xf32, #tpu.memory_space<vmem>>, %arg12: memref<1x128x512xbf16, #tpu.memory_space<vmem>>, %arg13: memref<1x1x512xf32, #tpu.memory_space<vmem>>, %arg14: memref<1x512x128xbf16, #tpu.memory_space<vmem>>, %arg15: memref<1x1x128xf32, #tpu.memory_space<vmem>>, %arg16: memref<1x128xf32, #tpu.memory_space<vmem>>, %arg17: memref<1x128xf32, #tpu.memory_space<vmem>>, %arg18: memref<8x128xf32, #tpu.memory_space<vmem>>) attributes {dimension_semantics = [#tpu.dimension_semantics<parallel>, #tpu.dimension_semantics<arbitrary>], iteration_bounds = array<i64: 2, 2>, scalar_prefetch = 0 : i64, scratch_operands = 0 : i64, tpu.core_type = #tpu.core_type<tc>, window_params = [{transform_indices = @transform_0, window_bounds = array<i64: 8, 128>}, {transform_indices = @transform_1, window_bounds = array<i64: 1, 1, 8>}, {transform_indices = @transform_2, window_bounds = array<i64: 1, 1, 128>}, {transform_indices = @transform_3, window_bounds = array<i64: 1, 1, 128>}, {transform_indices = @transform_4, window_bounds = array<i64: 1, 128, 384>}, {transform_indices = @transform_5, window_bounds = array<i64: 1, 1, 384>}, {transform_indices = @transform_6, window_bounds = array<i64: 1, 128, 128>}, {transform_indices = @transform_7, window_bounds = array<i64: 1, 1, 128>}, {transform_indices = @transform_8, window_bounds = array<i64: 1, 1, 128>}, {transform_indices = @transform_9, window_bounds = array<i64: 1, 1, 128>}, {transform_indices = @transform_10, window_bounds = array<i64: 1, 128, 512>}, {transform_indices = @transform_11, window_bounds = array<i64: 1, 1, 512>}, {transform_indices = @transform_12, window_bounds = array<i64: 1, 512, 128>}, {transform_indices = @transform_13, window_bounds = array<i64: 1, 1, 128>}, {pipeline_mode = #tpu.pipeline_mode<synchronous>, transform_indices = @transform_14, window_bounds = array<i64: 1, 128>}, {pipeline_mode = #tpu.pipeline_mode<synchronous>, transform_indices = @transform_15, window_bounds = array<i64: 1, 128>}, {transform_indices = @transform_16, window_bounds = array<i64: 8, 128>}]} {
    %c0_i32 = arith.constant 0 : i32
    %0 = arith.cmpi eq, %arg1, %c0_i32 : i32
    %1 = arith.extui %0 : i1 to i32
    %c0_i32_0 = arith.constant 0 : i32
    %2 = arith.cmpi ne, %1, %c0_i32_0 : i32
    scf.if %2 {
      %c0_77 = arith.constant 0 : index
      %c0_78 = arith.constant 0 : index
      %192 = vector.load %arg2[%c0_77, %c0_78] : memref<8x128xf32, #tpu.memory_space<vmem>>, vector<8x128xf32>
      %c0_79 = arith.constant 0 : index
      %c0_80 = arith.constant 0 : index
      %193 = vector.load %arg18[%c0_79, %c0_80] : memref<8x128xf32, #tpu.memory_space<vmem>>, vector<8x128xf32>
      tpu.vector_store %arg18[%c0_79, %c0_80], %192 {strides = array<i32>} : memref<8x128xf32, #tpu.memory_space<vmem>>, vector<8x128xf32>,
    } else {
    }
    %c0 = arith.constant 0 : index
    %c0_1 = arith.constant 0 : index
    %3 = vector.load %arg18[%c0, %c0_1] : memref<8x128xf32, #tpu.memory_space<vmem>>, vector<8x128xf32>
    %c0_2 = arith.constant 0 : index
    %c0_3 = arith.constant 0 : index
    %c0_4 = arith.constant 0 : index
    %4 = vector.load %arg4[%c0_2, %c0_3, %c0_4] : memref<1x1x128xf32, #tpu.memory_space<vmem>>, vector<1x1x128xf32>
    %5 = vector.shape_cast %4 : vector<1x1x128xf32> to vector<1x128xf32>
    %c0_5 = arith.constant 0 : index
    %c0_6 = arith.constant 0 : index
    %c0_7 = arith.constant 0 : index
    %6 = vector.load %arg5[%c0_5, %c0_6, %c0_7] : memref<1x1x128xf32, #tpu.memory_space<vmem>>, vector<1x1x128xf32>
    %7 = vector.shape_cast %6 : vector<1x1x128xf32> to vector<1x128xf32>
    %cst = arith.constant dense<0.000000e+00> : vector<8xf32>
    %8 = vector.multi_reduction <add>, %3, %cst [1] : vector<8x128xf32> to vector<8xf32>
    %9 = vector.shape_cast %8 : vector<8xf32> to vector<8x1xf32>
    %cst_8 = arith.constant 1.280000e+02 : f32
    %10 = vector.broadcast %cst_8 : f32 to vector<8x1xf32>
    %11 = arith.divf %9, %10 : vector<8x1xf32>
    %12 = vector.broadcast %11 : vector<8x1xf32> to vector<8x128xf32>
    %13 = arith.subf %3, %12 : vector<8x128xf32>
    %14 = arith.mulf %13, %13 : vector<8x128xf32>
    %cst_9 = arith.constant dense<0.000000e+00> : vector<8xf32>
    %15 = vector.multi_reduction <add>, %14, %cst_9 [1] : vector<8x128xf32> to vector<8xf32>
    %16 = vector.shape_cast %15 : vector<8xf32> to vector<8x1xf32>
    %cst_10 = arith.constant 1.280000e+02 : f32
    %17 = vector.broadcast %cst_10 : f32 to vector<8x1xf32>
    %18 = arith.divf %16, %17 : vector<8x1xf32>
    %cst_11 = arith.constant 9.99999974E-6 : f32
    %19 = vector.broadcast %cst_11 : f32 to vector<8x1xf32>
    %20 = arith.addf %18, %19 : vector<8x1xf32>
    %21 = math.rsqrt %20 : vector<8x1xf32>
    %22 = vector.broadcast %21 : vector<8x1xf32> to vector<8x128xf32>
    %23 = arith.mulf %13, %22 : vector<8x128xf32>
    %24 = vector.broadcast %5 : vector<1x128xf32> to vector<8x128xf32>
    %25 = arith.mulf %23, %24 : vector<8x128xf32>
    %26 = vector.broadcast %7 : vector<1x128xf32> to vector<8x128xf32>
    %27 = arith.addf %25, %26 : vector<8x128xf32>
    %28 = arith.truncf %27 : vector<8x128xf32> to vector<8x128xbf16>
    %c0_12 = arith.constant 0 : index
    %c0_13 = arith.constant 0 : index
    %c0_14 = arith.constant 0 : index
    %29 = vector.load %arg6[%c0_12, %c0_13, %c0_14] : memref<1x128x384xbf16, #tpu.memory_space<vmem>>, vector<1x128x384xbf16>
    %30 = vector.shape_cast %29 : vector<1x128x384xbf16> to vector<128x384xbf16>
    %cst_15 = arith.constant dense<0.000000e+00> : vector<8x384xf32>
    %31 = tpu.matmul %28, %30, %cst_15 {dimension_numbers = #tpu.dot_dimension_numbers<[1], [0], [0], [1], [0, 0, 1, 1], [], []>} : vector<8x128xbf16>, vector<128x384xbf16>, vector<8x384xf32> -> vector<8x384xf32>
    %c0_16 = arith.constant 0 : index
    %c0_17 = arith.constant 0 : index
    %c0_18 = arith.constant 0 : index
    %32 = vector.load %arg7[%c0_16, %c0_17, %c0_18] : memref<1x1x384xf32, #tpu.memory_space<vmem>>, vector<1x1x384xf32>
    %33 = vector.shape_cast %32 : vector<1x1x384xf32> to vector<1x384xf32>
    %34 = vector.broadcast %33 : vector<1x384xf32> to vector<8x384xf32>
    %35 = arith.addf %31, %34 : vector<8x384xf32>
    %36 = vector.extract_strided_slice %35 {offsets = [0, 0], sizes = [8, 128], strides = [1, 1]} : vector<8x384xf32> to vector<8x128xf32>
    %cst_19 = arith.constant 0.176776692 : f32
    %37 = vector.broadcast %cst_19 : f32 to vector<8x128xf32>
    %38 = arith.mulf %36, %37 : vector<8x128xf32>
    %39 = vector.extract_strided_slice %35 {offsets = [0, 128], sizes = [8, 128], strides = [1, 1]} : vector<8x384xf32> to vector<8x128xf32>
    %40 = vector.extract_strided_slice %35 {offsets = [0, 256], sizes = [8, 128], strides = [1, 1]} : vector<8x384xf32> to vector<8x128xf32>
    %41 = vector.extract_strided_slice %38 {offsets = [0, 0], sizes = [8, 32], strides = [1, 1]} : vector<8x128xf32> to vector<8x32xf32>
    %42 = vector.extract_strided_slice %38 {offsets = [0, 32], sizes = [8, 32], strides = [1, 1]} : vector<8x128xf32> to vector<8x32xf32>
    %43 = vector.extract_strided_slice %38 {offsets = [0, 64], sizes = [8, 32], strides = [1, 1]} : vector<8x128xf32> to vector<8x32xf32>
    %44 = vector.extract_strided_slice %38 {offsets = [0, 96], sizes = [8, 32], strides = [1, 1]} : vector<8x128xf32> to vector<8x32xf32>
    %45 = vector.shape_cast %41 : vector<8x32xf32> to vector<1x8x32xf32>
    %46 = vector.shape_cast %42 : vector<8x32xf32> to vector<1x8x32xf32>
    %47 = vector.shape_cast %43 : vector<8x32xf32> to vector<1x8x32xf32>
    %48 = vector.shape_cast %44 : vector<8x32xf32> to vector<1x8x32xf32>
    %49 = tpu.concatenate %45, %46, %47, %48 in 0 : vector<1x8x32xf32>, vector<1x8x32xf32>, vector<1x8x32xf32>, vector<1x8x32xf32> -> vector<4x8x32xf32>
    %50 = arith.truncf %49 : vector<4x8x32xf32> to vector<4x8x32xbf16>
    %51 = vector.extract_strided_slice %39 {offsets = [0, 0], sizes = [8, 32], strides = [1, 1]} : vector<8x128xf32> to vector<8x32xf32>
    %52 = vector.extract_strided_slice %39 {offsets = [0, 32], sizes = [8, 32], strides = [1, 1]} : vector<8x128xf32> to vector<8x32xf32>
    %53 = vector.extract_strided_slice %39 {offsets = [0, 64], sizes = [8, 32], strides = [1, 1]} : vector<8x128xf32> to vector<8x32xf32>
    %54 = vector.extract_strided_slice %39 {offsets = [0, 96], sizes = [8, 32], strides = [1, 1]} : vector<8x128xf32> to vector<8x32xf32>
    %55 = vector.shape_cast %51 : vector<8x32xf32> to vector<1x8x32xf32>
    %56 = vector.shape_cast %52 : vector<8x32xf32> to vector<1x8x32xf32>
    %57 = vector.shape_cast %53 : vector<8x32xf32> to vector<1x8x32xf32>
    %58 = vector.shape_cast %54 : vector<8x32xf32> to vector<1x8x32xf32>
    %59 = tpu.concatenate %55, %56, %57, %58 in 0 : vector<1x8x32xf32>, vector<1x8x32xf32>, vector<1x8x32xf32>, vector<1x8x32xf32> -> vector<4x8x32xf32>
    %60 = arith.truncf %59 : vector<4x8x32xf32> to vector<4x8x32xbf16>
    %61 = vector.extract_strided_slice %40 {offsets = [0, 0], sizes = [8, 32], strides = [1, 1]} : vector<8x128xf32> to vector<8x32xf32>
    %62 = vector.extract_strided_slice %40 {offsets = [0, 32], sizes = [8, 32], strides = [1, 1]} : vector<8x128xf32> to vector<8x32xf32>
    %63 = vector.extract_strided_slice %40 {offsets = [0, 64], sizes = [8, 32], strides = [1, 1]} : vector<8x128xf32> to vector<8x32xf32>
    %64 = vector.extract_strided_slice %40 {offsets = [0, 96], sizes = [8, 32], strides = [1, 1]} : vector<8x128xf32> to vector<8x32xf32>
    %65 = vector.shape_cast %61 : vector<8x32xf32> to vector<1x8x32xf32>
    %66 = vector.shape_cast %62 : vector<8x32xf32> to vector<1x8x32xf32>
    %67 = vector.shape_cast %63 : vector<8x32xf32> to vector<1x8x32xf32>
    %68 = vector.shape_cast %64 : vector<8x32xf32> to vector<1x8x32xf32>
    %69 = tpu.concatenate %65, %66, %67, %68 in 0 : vector<1x8x32xf32>, vector<1x8x32xf32>, vector<1x8x32xf32>, vector<1x8x32xf32> -> vector<4x8x32xf32>
    %70 = arith.truncf %69 : vector<4x8x32xf32> to vector<4x8x32xbf16>
    "tpu.trace_start"() <{level = 10 : i32, message = "hnd,hmd->hnm"}> : () -> ()
    %cst_20 = arith.constant dense<0.000000e+00> : vector<4x8x8xf32>
    %71 = tpu.matmul %50, %60, %cst_20 {dimension_numbers = #tpu.dot_dimension_numbers<[2], [2], [1], [1], [0, 0, 0, 1, 1, 1], [0], [0]>} : vector<4x8x32xbf16>, vector<4x8x32xbf16>, vector<4x8x8xf32> -> vector<4x8x8xf32>
    "tpu.trace_stop"() : () -> ()
    %c0_21 = arith.constant 0 : index
    %c0_22 = arith.constant 0 : index
    %c0_23 = arith.constant 0 : index
    %72 = vector.load %arg3[%c0_21, %c0_22, %c0_23] : memref<1x1x8xf32, #tpu.memory_space<vmem>>, vector<1x1x8xf32>
    %73 = vector.broadcast %72 : vector<1x1x8xf32> to vector<4x8x8xf32>
    %74 = arith.addf %71, %73 : vector<4x8x8xf32>
    %cst_24 = arith.constant dense<0xFF800000> : vector<4x8xf32>
    %75 = vector.multi_reduction <maximumf>, %74, %cst_24 [2] : vector<4x8x8xf32> to vector<4x8xf32>
    %76 = vector.shape_cast %75 : vector<4x8xf32> to vector<4x8x1xf32>
    %77 = vector.broadcast %76 : vector<4x8x1xf32> to vector<4x8x8xf32>
    %78 = arith.subf %74, %77 : vector<4x8x8xf32>
    %79 = math.exp %78 : vector<4x8x8xf32>
    %cst_25 = arith.constant dense<0.000000e+00> : vector<4x8xf32>
    %80 = vector.multi_reduction <add>, %79, %cst_25 [2] : vector<4x8x8xf32> to vector<4x8xf32>
    %81 = vector.shape_cast %80 : vector<4x8xf32> to vector<4x8x1xf32>
    %82 = tpu.reciprocal %81 {approx = true} : vector<4x8x1xf32> -> vector<4x8x1xf32>
    %83 = vector.broadcast %82 : vector<4x8x1xf32> to vector<4x8x8xf32>
    %84 = arith.mulf %79, %83 : vector<4x8x8xf32>
    %85 = arith.truncf %84 : vector<4x8x8xf32> to vector<4x8x8xbf16>
    "tpu.trace_start"() <{level = 10 : i32, message = "hnm,hmd->hnd"}> : () -> ()
    %cst_26 = arith.constant dense<0.000000e+00> : vector<4x8x32xf32>
    %86 = tpu.matmul %85, %70, %cst_26 {dimension_numbers = #tpu.dot_dimension_numbers<[2], [1], [1], [2], [0, 0, 0, 1, 1, 2], [0], [0]>} : vector<4x8x8xbf16>, vector<4x8x32xbf16>, vector<4x8x32xf32> -> vector<4x8x32xf32>
    "tpu.trace_stop"() : () -> ()
    %87 = vector.extract_strided_slice %86 {offsets = [0, 0, 0], sizes = [1, 8, 32], strides = [1, 1, 1]} : vector<4x8x32xf32> to vector<1x8x32xf32>
    %88 = vector.shape_cast %87 : vector<1x8x32xf32> to vector<8x32xf32>
    %89 = vector.extract_strided_slice %86 {offsets = [1, 0, 0], sizes = [1, 8, 32], strides = [1, 1, 1]} : vector<4x8x32xf32> to vector<1x8x32xf32>
    %90 = vector.shape_cast %89 : vector<1x8x32xf32> to vector<8x32xf32>
    %91 = vector.extract_strided_slice %86 {offsets = [2, 0, 0], sizes = [1, 8, 32], strides = [1, 1, 1]} : vector<4x8x32xf32> to vector<1x8x32xf32>
    %92 = vector.shape_cast %91 : vector<1x8x32xf32> to vector<8x32xf32>
    %93 = vector.extract_strided_slice %86 {offsets = [3, 0, 0], sizes = [1, 8, 32], strides = [1, 1, 1]} : vector<4x8x32xf32> to vector<1x8x32xf32>
    %94 = vector.shape_cast %93 : vector<1x8x32xf32> to vector<8x32xf32>
    %95 = tpu.concatenate %88, %90, %92, %94 in 1 : vector<8x32xf32>, vector<8x32xf32>, vector<8x32xf32>, vector<8x32xf32> -> vector<8x128xf32>
    %96 = arith.truncf %95 : vector<8x128xf32> to vector<8x128xbf16>
    %c0_27 = arith.constant 0 : index
    %c0_28 = arith.constant 0 : index
    %c0_29 = arith.constant 0 : index
    %97 = vector.load %arg8[%c0_27, %c0_28, %c0_29] : memref<1x128x128xbf16, #tpu.memory_space<vmem>>, vector<1x128x128xbf16>
    %98 = vector.shape_cast %97 : vector<1x128x128xbf16> to vector<128x128xbf16>
    %cst_30 = arith.constant dense<0.000000e+00> : vector<8x128xf32>
    %99 = tpu.matmul %96, %98, %cst_30 {dimension_numbers = #tpu.dot_dimension_numbers<[1], [0], [0], [1], [0, 0, 1, 1], [], []>} : vector<8x128xbf16>, vector<128x128xbf16>, vector<8x128xf32> -> vector<8x128xf32>
    %c0_31 = arith.constant 0 : index
    %c0_32 = arith.constant 0 : index
    %c0_33 = arith.constant 0 : index
    %100 = vector.load %arg9[%c0_31, %c0_32, %c0_33] : memref<1x1x128xf32, #tpu.memory_space<vmem>>, vector<1x1x128xf32>
    %101 = vector.shape_cast %100 : vector<1x1x128xf32> to vector<1x128xf32>
    %102 = vector.broadcast %101 : vector<1x128xf32> to vector<8x128xf32>
    %103 = arith.addf %99, %102 : vector<8x128xf32>
    %104 = arith.addf %3, %103 : vector<8x128xf32>
    %c0_34 = arith.constant 0 : index
    %c0_35 = arith.constant 0 : index
    %c0_36 = arith.constant 0 : index
    %105 = vector.load %arg10[%c0_34, %c0_35, %c0_36] : memref<1x1x128xf32, #tpu.memory_space<vmem>>, vector<1x1x128xf32>
    %106 = vector.shape_cast %105 : vector<1x1x128xf32> to vector<1x128xf32>
    %c0_37 = arith.constant 0 : index
    %c0_38 = arith.constant 0 : index
    %c0_39 = arith.constant 0 : index
    %107 = vector.load %arg11[%c0_37, %c0_38, %c0_39] : memref<1x1x128xf32, #tpu.memory_space<vmem>>, vector<1x1x128xf32>
    %108 = vector.shape_cast %107 : vector<1x1x128xf32> to vector<1x128xf32>
    %cst_40 = arith.constant dense<0.000000e+00> : vector<8xf32>
    %109 = vector.multi_reduction <add>, %104, %cst_40 [1] : vector<8x128xf32> to vector<8xf32>
    %110 = vector.shape_cast %109 : vector<8xf32> to vector<8x1xf32>
    %cst_41 = arith.constant 1.280000e+02 : f32
    %111 = vector.broadcast %cst_41 : f32 to vector<8x1xf32>
    %112 = arith.divf %110, %111 : vector<8x1xf32>
    %113 = vector.broadcast %112 : vector<8x1xf32> to vector<8x128xf32>
    %114 = arith.subf %104, %113 : vector<8x128xf32>
    %115 = arith.mulf %114, %114 : vector<8x128xf32>
    %cst_42 = arith.constant dense<0.000000e+00> : vector<8xf32>
    %116 = vector.multi_reduction <add>, %115, %cst_42 [1] : vector<8x128xf32> to vector<8xf32>
    %117 = vector.shape_cast %116 : vector<8xf32> to vector<8x1xf32>
    %cst_43 = arith.constant 1.280000e+02 : f32
    %118 = vector.broadcast %cst_43 : f32 to vector<8x1xf32>
    %119 = arith.divf %117, %118 : vector<8x1xf32>
    %cst_44 = arith.constant 9.99999974E-6 : f32
    %120 = vector.broadcast %cst_44 : f32 to vector<8x1xf32>
    %121 = arith.addf %119, %120 : vector<8x1xf32>
    %122 = math.rsqrt %121 : vector<8x1xf32>
    %123 = vector.broadcast %122 : vector<8x1xf32> to vector<8x128xf32>
    %124 = arith.mulf %114, %123 : vector<8x128xf32>
    %125 = vector.broadcast %106 : vector<1x128xf32> to vector<8x128xf32>
    %126 = arith.mulf %124, %125 : vector<8x128xf32>
    %127 = vector.broadcast %108 : vector<1x128xf32> to vector<8x128xf32>
    %128 = arith.addf %126, %127 : vector<8x128xf32>
    %129 = arith.truncf %128 : vector<8x128xf32> to vector<8x128xbf16>
    %c0_45 = arith.constant 0 : index
    %c0_46 = arith.constant 0 : index
    %c0_47 = arith.constant 0 : index
    %130 = vector.load %arg12[%c0_45, %c0_46, %c0_47] : memref<1x128x512xbf16, #tpu.memory_space<vmem>>, vector<1x128x512xbf16>
    %131 = vector.shape_cast %130 : vector<1x128x512xbf16> to vector<128x512xbf16>
    %cst_48 = arith.constant dense<0.000000e+00> : vector<8x512xf32>
    %132 = tpu.matmul %129, %131, %cst_48 {dimension_numbers = #tpu.dot_dimension_numbers<[1], [0], [0], [1], [0, 0, 1, 1], [], []>} : vector<8x128xbf16>, vector<128x512xbf16>, vector<8x512xf32> -> vector<8x512xf32>
    %c0_49 = arith.constant 0 : index
    %c0_50 = arith.constant 0 : index
    %c0_51 = arith.constant 0 : index
    %133 = vector.load %arg13[%c0_49, %c0_50, %c0_51] : memref<1x1x512xf32, #tpu.memory_space<vmem>>, vector<1x1x512xf32>
    %134 = vector.shape_cast %133 : vector<1x1x512xf32> to vector<1x512xf32>
    %135 = vector.broadcast %134 : vector<1x512xf32> to vector<8x512xf32>
    %136 = arith.addf %132, %135 : vector<8x512xf32>
    %cst_52 = arith.constant 5.000000e-01 : f32
    %137 = vector.broadcast %cst_52 : f32 to vector<8x512xf32>
    %138 = arith.mulf %137, %136 : vector<8x512xf32>
    %cst_53 = arith.constant 0.707106769 : f32
    %139 = vector.broadcast %cst_53 : f32 to vector<8x512xf32>
    %140 = arith.mulf %136, %139 : vector<8x512xf32>
    %141 = math.absf %140 : vector<8x512xf32>
    %cst_54 = arith.constant 0.327591091 : f32
    %142 = vector.broadcast %cst_54 : f32 to vector<8x512xf32>
    %143 = arith.mulf %142, %141 : vector<8x512xf32>
    %cst_55 = arith.constant 1.000000e+00 : f32
    %144 = vector.broadcast %cst_55 : f32 to vector<8x512xf32>
    %145 = arith.addf %144, %143 : vector<8x512xf32>
    %cst_56 = arith.constant 1.000000e+00 : f32
    %146 = vector.broadcast %cst_56 : f32 to vector<8x512xf32>
    %147 = arith.divf %146, %145 : vector<8x512xf32>
    %cst_57 = arith.constant 1.06140542 : f32
    %148 = vector.broadcast %cst_57 : f32 to vector<8x512xf32>
    %149 = arith.mulf %148, %147 : vector<8x512xf32>
    %cst_58 = arith.constant -1.45315206 : f32
    %150 = vector.broadcast %cst_58 : f32 to vector<8x512xf32>
    %151 = arith.addf %149, %150 : vector<8x512xf32>
    %152 = arith.mulf %151, %147 : vector<8x512xf32>
    %cst_59 = arith.constant 1.42141378 : f32
    %153 = vector.broadcast %cst_59 : f32 to vector<8x512xf32>
    %154 = arith.addf %152, %153 : vector<8x512xf32>
    %155 = arith.mulf %154, %147 : vector<8x512xf32>
    %cst_60 = arith.constant -0.284496725 : f32
    %156 = vector.broadcast %cst_60 : f32 to vector<8x512xf32>
    %157 = arith.addf %155, %156 : vector<8x512xf32>
    %158 = arith.mulf %157, %147 : vector<8x512xf32>
    %cst_61 = arith.constant 0.254829586 : f32
    %159 = vector.broadcast %cst_61 : f32 to vector<8x512xf32>
    %160 = arith.addf %158, %159 : vector<8x512xf32>
    %161 = arith.mulf %160, %147 : vector<8x512xf32>
    %162 = arith.mulf %141, %141 : vector<8x512xf32>
    %cst_62 = arith.constant 0.000000e+00 : f32
    %163 = vector.broadcast %cst_62 : f32 to vector<8x512xf32>
    %164 = arith.subf %163, %162 : vector<8x512xf32>
    %165 = math.exp %164 : vector<8x512xf32>
    %166 = arith.mulf %161, %165 : vector<8x512xf32>
    %cst_63 = arith.constant 1.000000e+00 : f32
    %167 = vector.broadcast %cst_63 : f32 to vector<8x512xf32>
    %168 = arith.subf %167, %166 : vector<8x512xf32>
    %cst_64 = arith.constant 0.000000e+00 : f32
    %169 = vector.broadcast %cst_64 : f32 to vector<8x512xf32>
    %170 = arith.cmpf oge, %140, %169 : vector<8x512xf32>
    %cst_65 = arith.constant 0.000000e+00 : f32
    %171 = vector.broadcast %cst_65 : f32 to vector<8x512xf32>
    %172 = arith.subf %171, %168 : vector<8x512xf32>
    %173 = arith.select %170, %168, %172 : vector<8x512xi1>, vector<8x512xf32>
    %cst_66 = arith.constant 1.000000e+00 : f32
    %174 = vector.broadcast %cst_66 : f32 to vector<8x512xf32>
    %175 = arith.addf %174, %173 : vector<8x512xf32>
    %176 = arith.mulf %138, %175 : vector<8x512xf32>
    %177 = arith.truncf %176 : vector<8x512xf32> to vector<8x512xbf16>
    %c0_67 = arith.constant 0 : index
    %c0_68 = arith.constant 0 : index
    %c0_69 = arith.constant 0 : index
    %178 = vector.load %arg14[%c0_67, %c0_68, %c0_69] : memref<1x512x128xbf16, #tpu.memory_space<vmem>>, vector<1x512x128xbf16>
    %179 = vector.shape_cast %178 : vector<1x512x128xbf16> to vector<512x128xbf16>
    %cst_70 = arith.constant dense<0.000000e+00> : vector<8x128xf32>
    %180 = tpu.matmul %177, %179, %cst_70 {dimension_numbers = #tpu.dot_dimension_numbers<[1], [0], [0], [1], [0, 0, 1, 1], [], []>} : vector<8x512xbf16>, vector<512x128xbf16>, vector<8x128xf32> -> vector<8x128xf32>
    %c0_71 = arith.constant 0 : index
    %c0_72 = arith.constant 0 : index
    %c0_73 = arith.constant 0 : index
    %181 = vector.load %arg15[%c0_71, %c0_72, %c0_73] : memref<1x1x128xf32, #tpu.memory_space<vmem>>, vector<1x1x128xf32>
    %182 = vector.shape_cast %181 : vector<1x1x128xf32> to vector<1x128xf32>
    %183 = vector.broadcast %182 : vector<1x128xf32> to vector<8x128xf32>
    %184 = arith.addf %180, %183 : vector<8x128xf32>
    %185 = arith.addf %104, %184 : vector<8x128xf32>
    %c1_i32 = arith.constant 1 : i32
    %186 = arith.cmpi slt, %arg1, %c1_i32 : i32
    %187 = arith.extui %186 : i1 to i32
    %c0_i32_74 = arith.constant 0 : i32
    %188 = arith.cmpi ne, %187, %c0_i32_74 : i32
    scf.if %188 {
      %c0_77 = arith.constant 0 : index
      %c0_78 = arith.constant 0 : index
      %192 = vector.load %arg18[%c0_77, %c0_78] : memref<8x128xf32, #tpu.memory_space<vmem>>, vector<8x128xf32>
      tpu.vector_store %arg18[%c0_77, %c0_78], %185 {strides = array<i32>} : memref<8x128xf32, #tpu.memory_space<vmem>>, vector<8x128xf32>,
    } else {
    }
    %c1_i32_75 = arith.constant 1 : i32
    %189 = arith.cmpi eq, %arg1, %c1_i32_75 : i32
    %190 = arith.extui %189 : i1 to i32
    %c0_i32_76 = arith.constant 0 : i32
    %191 = arith.cmpi ne, %190, %c0_i32_76 : i32
    scf.if %191 {
      %c0_77 = arith.constant 0 : index
      %c0_78 = arith.constant 0 : index
      %192 = vector.load %arg16[%c0_77, %c0_78] : memref<1x128xf32, #tpu.memory_space<vmem>>, vector<1x128xf32>
      %c0_79 = arith.constant 0 : index
      %c0_80 = arith.constant 0 : index
      %193 = vector.load %arg17[%c0_79, %c0_80] : memref<1x128xf32, #tpu.memory_space<vmem>>, vector<1x128xf32>
      %cst_81 = arith.constant dense<0.000000e+00> : vector<8xf32>
      %194 = vector.multi_reduction <add>, %185, %cst_81 [1] : vector<8x128xf32> to vector<8xf32>
      %195 = vector.shape_cast %194 : vector<8xf32> to vector<8x1xf32>
      %cst_82 = arith.constant 1.280000e+02 : f32
      %196 = vector.broadcast %cst_82 : f32 to vector<8x1xf32>
      %197 = arith.divf %195, %196 : vector<8x1xf32>
      %198 = vector.broadcast %197 : vector<8x1xf32> to vector<8x128xf32>
      %199 = arith.subf %185, %198 : vector<8x128xf32>
      %200 = arith.mulf %199, %199 : vector<8x128xf32>
      %cst_83 = arith.constant dense<0.000000e+00> : vector<8xf32>
      %201 = vector.multi_reduction <add>, %200, %cst_83 [1] : vector<8x128xf32> to vector<8xf32>
      %202 = vector.shape_cast %201 : vector<8xf32> to vector<8x1xf32>
      %cst_84 = arith.constant 1.280000e+02 : f32
      %203 = vector.broadcast %cst_84 : f32 to vector<8x1xf32>
      %204 = arith.divf %202, %203 : vector<8x1xf32>
      %cst_85 = arith.constant 9.99999974E-6 : f32
      %205 = vector.broadcast %cst_85 : f32 to vector<8x1xf32>
      %206 = arith.addf %204, %205 : vector<8x1xf32>
      %207 = math.rsqrt %206 : vector<8x1xf32>
      %208 = vector.broadcast %207 : vector<8x1xf32> to vector<8x128xf32>
      %209 = arith.mulf %199, %208 : vector<8x128xf32>
      %210 = vector.broadcast %192 : vector<1x128xf32> to vector<8x128xf32>
      %211 = arith.mulf %209, %210 : vector<8x128xf32>
      %212 = vector.broadcast %193 : vector<1x128xf32> to vector<8x128xf32>
      %213 = arith.addf %211, %212 : vector<8x128xf32>
      %c0_86 = arith.constant 0 : index
      %c0_87 = arith.constant 0 : index
      %214 = vector.load %arg18[%c0_86, %c0_87] : memref<8x128xf32, #tpu.memory_space<vmem>>, vector<8x128xf32>
      tpu.vector_store %arg18[%c0_86, %c0_87], %213 {strides = array<i32>} : memref<8x128xf32, #tpu.memory_space<vmem>>, vector<8x128xf32>,
    } else {
    }
    return
  }
  func.func @transform_0(%arg0: i32, %arg1: i32) -> (i32, i32) {
    %c0_i32 = arith.constant 0 : i32
    %c0_i32_0 = arith.constant 0 : i32
    return %arg0, %c0_i32 : i32, i32
  }
  func.func @transform_1(%arg0: i32, %arg1: i32) -> (i32, i32, i32) {
    %c0_i32 = arith.constant 0 : i32
    %c0_i32_0 = arith.constant 0 : i32
    %c0_i32_1 = arith.constant 0 : i32
    return %arg0, %c0_i32, %c0_i32_0 : i32, i32, i32
  }
  func.func @transform_2(%arg0: i32, %arg1: i32) -> (i32, i32, i32) {
    %c0_i32 = arith.constant 0 : i32
    %c0_i32_0 = arith.constant 0 : i32
    %c0_i32_1 = arith.constant 0 : i32
    return %arg1, %c0_i32, %c0_i32_0 : i32, i32, i32
  }
  func.func @transform_3(%arg0: i32, %arg1: i32) -> (i32, i32, i32) {
    %c0_i32 = arith.constant 0 : i32
    %c0_i32_0 = arith.constant 0 : i32
    %c0_i32_1 = arith.constant 0 : i32
    return %arg1, %c0_i32, %c0_i32_0 : i32, i32, i32
  }
  func.func @transform_4(%arg0: i32, %arg1: i32) -> (i32, i32, i32) {
    %c0_i32 = arith.constant 0 : i32
    %c0_i32_0 = arith.constant 0 : i32
    %c0_i32_1 = arith.constant 0 : i32
    return %arg1, %c0_i32, %c0_i32_0 : i32, i32, i32
  }
  func.func @transform_5(%arg0: i32, %arg1: i32) -> (i32, i32, i32) {
    %c0_i32 = arith.constant 0 : i32
    %c0_i32_0 = arith.constant 0 : i32
    %c0_i32_1 = arith.constant 0 : i32
    return %arg1, %c0_i32, %c0_i32_0 : i32, i32, i32
  }
  func.func @transform_6(%arg0: i32, %arg1: i32) -> (i32, i32, i32) {
    %c0_i32 = arith.constant 0 : i32
    %c0_i32_0 = arith.constant 0 : i32
    %c0_i32_1 = arith.constant 0 : i32
    return %arg1, %c0_i32, %c0_i32_0 : i32, i32, i32
  }
  func.func @transform_7(%arg0: i32, %arg1: i32) -> (i32, i32, i32) {
    %c0_i32 = arith.constant 0 : i32
    %c0_i32_0 = arith.constant 0 : i32
    %c0_i32_1 = arith.constant 0 : i32
    return %arg1, %c0_i32, %c0_i32_0 : i32, i32, i32
  }
  func.func @transform_8(%arg0: i32, %arg1: i32) -> (i32, i32, i32) {
    %c0_i32 = arith.constant 0 : i32
    %c0_i32_0 = arith.constant 0 : i32
    %c0_i32_1 = arith.constant 0 : i32
    return %arg1, %c0_i32, %c0_i32_0 : i32, i32, i32
  }
  func.func @transform_9(%arg0: i32, %arg1: i32) -> (i32, i32, i32) {
    %c0_i32 = arith.constant 0 : i32
    %c0_i32_0 = arith.constant 0 : i32
    %c0_i32_1 = arith.constant 0 : i32
    return %arg1, %c0_i32, %c0_i32_0 : i32, i32, i32
  }
  func.func @transform_10(%arg0: i32, %arg1: i32) -> (i32, i32, i32) {
    %c0_i32 = arith.constant 0 : i32
    %c0_i32_0 = arith.constant 0 : i32
    %c0_i32_1 = arith.constant 0 : i32
    return %arg1, %c0_i32, %c0_i32_0 : i32, i32, i32
  }
  func.func @transform_11(%arg0: i32, %arg1: i32) -> (i32, i32, i32) {
    %c0_i32 = arith.constant 0 : i32
    %c0_i32_0 = arith.constant 0 : i32
    %c0_i32_1 = arith.constant 0 : i32
    return %arg1, %c0_i32, %c0_i32_0 : i32, i32, i32
  }
  func.func @transform_12(%arg0: i32, %arg1: i32) -> (i32, i32, i32) {
    %c0_i32 = arith.constant 0 : i32
    %c0_i32_0 = arith.constant 0 : i32
    %c0_i32_1 = arith.constant 0 : i32
    return %arg1, %c0_i32, %c0_i32_0 : i32, i32, i32
  }
  func.func @transform_13(%arg0: i32, %arg1: i32) -> (i32, i32, i32) {
    %c0_i32 = arith.constant 0 : i32
    %c0_i32_0 = arith.constant 0 : i32
    %c0_i32_1 = arith.constant 0 : i32
    return %arg1, %c0_i32, %c0_i32_0 : i32, i32, i32
  }
  func.func @transform_14(%arg0: i32, %arg1: i32) -> (i32, i32) {
    %c0_i32 = arith.constant 0 : i32
    %c0_i32_0 = arith.constant 0 : i32
    %c0_i32_1 = arith.constant 0 : i32
    return %c0_i32, %c0_i32_0 : i32, i32
  }
  func.func @transform_15(%arg0: i32, %arg1: i32) -> (i32, i32) {
    %c0_i32 = arith.constant 0 : i32
    %c0_i32_0 = arith.constant 0 : i32
    %c0_i32_1 = arith.constant 0 : i32
    return %c0_i32, %c0_i32_0 : i32, i32
  }
  func.func @transform_16(%arg0: i32, %arg1: i32) -> (i32, i32) {
    %c0_i32 = arith.constant 0 : i32
    %c0_i32_0 = arith.constant 0 : i32
    return %arg0, %c0_i32 : i32, i32
  }
}

</mosaic_0001>

<llo_original>
// kernel: tpu_custom_call.1
$region0: #{tpu_custom_call.1}
  #allocation0 [shape = 'u32[]', space=smem, size = 0x4, offset = 0x4, fixed_abs, tag = 'smem constant byte address 0x4 - core index']
  #allocation1 [shape = 'u32[72,128]{1,0:T(1,128)}', space=vmem, size = 0x9000, scoped, tag = 'internal scratch']
  %s0 = inlined_call_operand.hbm [shape: f32[16,128], index: 0, kind: input, shape index: {}]
  %s1 = inlined_call_operand.hbm [shape: f32[2,1,8], index: 1, kind: input, shape index: {}]
  %s2 = inlined_call_operand.hbm [shape: f32[2,1,128], index: 2, kind: input, shape index: {}]
  %s3 = inlined_call_operand.vmem [shape: f32[2,1,128], index: 3, kind: input, shape index: {}]
  %s4 = inlined_call_operand.hbm [shape: bf16[2,128,384], index: 4, kind: input, shape index: {}]
  %s5 = inlined_call_operand.hbm [shape: f32[2,1,384], index: 5, kind: input, shape index: {}]
  %s6 = inlined_call_operand.hbm [shape: bf16[2,128,128], index: 6, kind: input, shape index: {}]
  %s7 = inlined_call_operand.hbm [shape: f32[2,1,128], index: 7, kind: input, shape index: {}]
  %s8 = inlined_call_operand.hbm [shape: f32[2,1,128], index: 8, kind: input, shape index: {}]
  %s9 = inlined_call_operand.hbm [shape: f32[2,1,128], index: 9, kind: input, shape index: {}]
  %s10 = inlined_call_operand.hbm [shape: bf16[2,128,512], index: 10, kind: input, shape index: {}]
  %s11 = inlined_call_operand.vmem [shape: f32[2,1,512], index: 11, kind: input, shape index: {}]
  %s12 = inlined_call_operand.hbm [shape: bf16[2,512,128], index: 12, kind: input, shape index: {}]
  %s13 = inlined_call_operand.vmem [shape: f32[2,1,128], index: 13, kind: input, shape index: {}]
  %s14 = inlined_call_operand.vmem [shape: f32[1,128], index: 14, kind: input, shape index: {}]
  %s15 = inlined_call_operand.vmem [shape: f32[1,128], index: 15, kind: input, shape index: {}]
  %s16 = inlined_call_operand.hbm [shape: f32[16,128], index: 16, kind: output, shape index: {}]
  %s17 = sld [smem:[#allocation0]]
  $region153: #{tpu_custom_call.1} parent=0
    _
  %s19 = ssub.s32 1, %s17
  %s20 = scalar_select 0, %s19, %s17
  $region1: #{tpu_custom_call.1} parent=0
    #allocation2 [shape = 'u8[8192]{0}', space=vmem, size = 0x2000, scoped, tag = 'input window, operand 0']
    #allocation3 [shape = 's32[2]{0}', space=sflag, size = 0x8, scoped, tag = 'scoped memory for tpu_custom_call.1']
    #allocation4 [shape = 's32[2]{0}', space=sflag, size = 0x8, scoped, tag = 'scoped memory for tpu_custom_call.1']
    #allocation5 [shape = 'u8[1024]{0}', space=vmem, size = 0x400, scoped, tag = 'input window, operand 1']
    #allocation6 [shape = 's32[2]{0}', space=sflag, size = 0x8, scoped, tag = 'scoped memory for tpu_custom_call.1']
    #allocation7 [shape = 'u8[1024]{0}', space=vmem, size = 0x400, scoped, tag = 'input window, operand 2']
    #allocation8 [shape = 'u8[196608]{0}', space=vmem, size = 0x30000, scoped, tag = 'input window, operand 4']
    #allocation9 [shape = 's32[2]{0}', space=sflag, size = 0x8, scoped, tag = 'scoped memory for tpu_custom_call.1']
    #allocation10 [shape = 'u8[3072]{0}', space=vmem, size = 0xc00, scoped, tag = 'input window, operand 5']
    #allocation11 [shape = 'u8[65536]{0}', space=vmem, size = 0x10000, scoped, tag = 'input window, operand 6']
    #allocation12 [shape = 's32[2]{0}', space=sflag, size = 0x8, scoped, tag = 'scoped memory for tpu_custom_call.1']
    #allocation13 [shape = 'u8[1024]{0}', space=vmem, size = 0x400, scoped, tag = 'input window, operand 7']
    #allocation14 [shape = 'u8[1024]{0}', space=vmem, size = 0x400, scoped, tag = 'input window, operand 8']
    #allocation15 [shape = 's32[2]{0}', space=sflag, size = 0x8, scoped, tag = 'scoped memory for tpu_custom_call.1']
    #allocation16 [shape = 'u8[1024]{0}', space=vmem, size = 0x400, scoped, tag = 'input window, operand 9']
    #allocation17 [shape = 'u8[262144]{0}', space=vmem, size = 0x40000, scoped, tag = 'input window, operand 10']
    #allocation18 [shape = 's32[2]{0}', space=sflag, size = 0x8, scoped, tag = 'scoped memory for tpu_custom_call.1']
    #allocation19 [shape = 'u8[262144]{0}', space=vmem, size = 0x40000, scoped, tag = 'input window, operand 12']
    #allocation20 [shape = 'u8[8192]{0}', space=vmem, size = 0x2000, scoped, tag = 'output window, operand 0']
    %21 = vsyncpa [#allocation3], 0
    %s22 = scalar_lea.sflag [#allocation3], 1
    %23 = vsyncpa %s22, 0
    %24 = vsyncpa [#allocation6], 0
    %s25 = scalar_lea.sflag [#allocation6], 1
    %26 = vsyncpa %s25, 0
    %27 = vsyncpa [#allocation9], 0
    %s28 = scalar_lea.sflag [#allocation9], 1
    %29 = vsyncpa %s28, 0
    %30 = vsyncpa [#allocation12], 0
    %s31 = scalar_lea.sflag [#allocation12], 1
    %32 = vsyncpa %s31, 0
    %33 = vsyncpa [#allocation15], 0
    %s34 = scalar_lea.sflag [#allocation15], 1
    %35 = vsyncpa %s34, 0
    %36 = vsyncpa [#allocation18], 0
    %s37 = scalar_lea.sflag [#allocation18], 1
    %38 = vsyncpa %s37, 0
    %39 = vsyncpa [#allocation4], 0
    %s40 = scalar_lea.sflag [#allocation4], 1
    %41 = vsyncpa %s40, 0
    loop: start=0, step=1, limit=6
    $region2: #{tpu_custom_call.1} parent=1 // loop_pre_header
      _
    $region3: #{tpu_custom_call.1} parent=1 // loop_header
      %s43 = sphi 0, %s47
      %p44 = scmp.ge.s32.totalorder %s43, 6
      %s50 = sphi 0, %s62
      %s51 = sphi 0, %s58
      %s52 = sphi 0, %s50
      %s53 = sphi 0, %s51
      %s54 = sphi 0, %s52
      %s55 = sphi 0, %s53
      %s65 = sphi 0, %s67
      %s68 = sphi 0, %s65
      %s69 = sphi 0, %s68
      %s85 = sphi 0, %s69
      %s91 = sphi 0, %s93
      %s94 = sphi 0, %s91
      %s95 = sphi 0, %s94
      %s111 = sphi 0, %s95
      %s117 = sphi 0, %s119
      %s120 = sphi 0, %s117
      %s121 = sphi 0, %s120
      %s137 = sphi 0, %s121
      %s143 = sphi 0, %s145
      %s146 = sphi 0, %s143
      %s147 = sphi 0, %s146
      %s163 = sphi 0, %s147
      %s169 = sphi 0, %s171
      %s172 = sphi 0, %s169
      %s173 = sphi 0, %s172
      %s189 = sphi 0, %s173
      %s195 = sphi 0, %s197
      %s198 = sphi 0, %s195
      %s199 = sphi 0, %s198
      %s215 = sphi 0, %s199
      %s221 = sphi 0, %s223
      %s224 = sphi 0, %s221
      %s225 = sphi 0, %s224
      %s241 = sphi 0, %s225
      %s247 = sphi 0, %s249
      %s250 = sphi 0, %s247
      %s251 = sphi 0, %s250
      %s267 = sphi 0, %s251
      %s273 = sphi 0, %s275
      %s276 = sphi 0, %s273
      %s277 = sphi 0, %s276
      %s293 = sphi 0, %s277
      %s299 = sphi 0, %s301
      %s302 = sphi 0, %s299
      %s303 = sphi 0, %s302
      %s319 = sphi 0, %s303
      %s325 = sphi 0, %s327
      %s328 = sphi 0, %s325
      %s329 = sphi 0, %s328
      %s345 = sphi 0, %s329
      %s351 = sphi 0, %s353
      %s354 = sphi 0, %s351
      %s355 = sphi 0, %s354
      %s371 = sphi 0, %s355
      %s377 = sphi 0, %s379
      %s380 = sphi 0, %s377
      %s381 = sphi 0, %s380
      %s397 = sphi 0, %s381
      %s403 = sphi 0, %s405
      %s406 = sphi 0, %s403
      %s407 = sphi 0, %s406
      %s423 = sphi 0, %s407
      %s427 = sphi 0, %s427
      %s429 = sphi 0, %s427
      %s430 = sphi 0, %s429
      %s444 = sphi 0, %s430
      %s448 = sphi 0, %s448
      %s450 = sphi 0, %s448
      %s451 = sphi 0, %s450
      %s465 = sphi 0, %s451
      %s471 = sphi 0, %s473
      %s474 = sphi 0, %s471
      %s475 = sphi 0, %s474
      %s491 = sphi 0, %s475
    $region4: #{tpu_custom_call.1} parent=1 // loop_header_branch
      %46 = sbr.rel (%p44) target = $region8
    $region5: #{tpu_custom_call.1} parent=1 // loop_body
      %s48 = ssub.s32 %s43, 1
      %s49 = ssub.s32 %s43, 2
      %s56 = sadd.s32 1, %s51
      %p57 = scmp.ge.s32.totalorder %s56, 2
      %s58 = scalar_select %p57, 0, %s56
      %s59 = sadd.s32 1, %s50
      %s60 = scalar_select %p57, %s59, %s50
      %p61 = scmp.ge.s32.totalorder %s60, 2
      %s62 = scalar_select %p61, 0, %s60
      %s63 = ssub.s32 %s50, %s62
      %p64 = scmp.eq.s32.totalorder %s63, 0
      %s66 = sadd.s32 %s65, 1
      %s67 = scalar_select %p64, %s65, %s66
      %p70 = pneg %p64
      %p71 = scmp.eq.s32.totalorder %s43, 3
      %p72 = por %p70, %p71
      %p73 = scmp.ne.s32.totalorder %s65, %s68
      %p74 = scmp.eq.s32.totalorder %s43, 0
      %p75 = por %p73, %p74
      %p76 = scmp.ne.s32.totalorder %s65, %s68
      %p77 = scmp.eq.s32.totalorder %s48, 3
      %p78 = por %p76, %p77
      %p79 = scmp.ne.s32.totalorder %s68, %s69
      %p80 = scmp.eq.s32.totalorder %s48, 0
      %p81 = por %p79, %p80
      %p82 = scmp.ne.s32.totalorder %s68, %s69
      %p83 = scmp.eq.s32.totalorder %s49, 3
      %p84 = por %p82, %p83
      %p86 = scmp.ne.s32.totalorder %s69, %s85
      %p87 = scmp.eq.s32.totalorder %s49, 0
      %p88 = por %p86, %p87
      %s89 = ssub.s32 %s50, %s62
      %p90 = scmp.eq.s32.totalorder %s89, 0
      %s92 = sadd.s32 %s91, 1
      %s93 = scalar_select %p90, %s91, %s92
      %p96 = pneg %p90
      %p97 = scmp.eq.s32.totalorder %s43, 3
      %p98 = por %p96, %p97
      %p99 = scmp.ne.s32.totalorder %s91, %s94
      %p100 = scmp.eq.s32.totalorder %s43, 0
      %p101 = por %p99, %p100
      %p102 = scmp.ne.s32.totalorder %s91, %s94
      %p103 = scmp.eq.s32.totalorder %s48, 3
      %p104 = por %p102, %p103
      %p105 = scmp.ne.s32.totalorder %s94, %s95
      %p106 = scmp.eq.s32.totalorder %s48, 0
      %p107 = por %p105, %p106
      %p108 = scmp.ne.s32.totalorder %s94, %s95
      %p109 = scmp.eq.s32.totalorder %s49, 3
      %p110 = por %p108, %p109
      %p112 = scmp.ne.s32.totalorder %s95, %s111
      %p113 = scmp.eq.s32.totalorder %s49, 0
      %p114 = por %p112, %p113
      %s115 = ssub.s32 %s51, %s58
      %p116 = scmp.eq.s32.totalorder %s115, 0
      %s118 = sadd.s32 %s117, 1
      %s119 = scalar_select %p116, %s117, %s118
      %p122 = pneg %p116
      %p123 = scmp.eq.s32.totalorder %s43, 3
      %p124 = por %p122, %p123
      %p125 = scmp.ne.s32.totalorder %s117, %s120
      %p126 = scmp.eq.s32.totalorder %s43, 0
      %p127 = por %p125, %p126
      %p128 = scmp.ne.s32.totalorder %s117, %s120
      %p129 = scmp.eq.s32.totalorder %s48, 3
      %p130 = por %p128, %p129
      %p131 = scmp.ne.s32.totalorder %s120, %s121
      %p132 = scmp.eq.s32.totalorder %s48, 0
      %p133 = por %p131, %p132
      %p134 = scmp.ne.s32.totalorder %s120, %s121
      %p135 = scmp.eq.s32.totalorder %s49, 3
      %p136 = por %p134, %p135
      %p138 = scmp.ne.s32.totalorder %s121, %s137
      %p139 = scmp.eq.s32.totalorder %s49, 0
      %p140 = por %p138, %p139
      %s141 = ssub.s32 %s51, %s58
      %p142 = scmp.eq.s32.totalorder %s141, 0
      %s144 = sadd.s32 %s143, 1
      %s145 = scalar_select %p142, %s143, %s144
      %p148 = pneg %p142
      %p149 = scmp.eq.s32.totalorder %s43, 3
      %p150 = por %p148, %p149
      %p151 = scmp.ne.s32.totalorder %s143, %s146
      %p152 = scmp.eq.s32.totalorder %s43, 0
      %p153 = por %p151, %p152
      %p154 = scmp.ne.s32.totalorder %s143, %s146
      %p155 = scmp.eq.s32.totalorder %s48, 3
      %p156 = por %p154, %p155
      %p157 = scmp.ne.s32.totalorder %s146, %s147
      %p158 = scmp.eq.s32.totalorder %s48, 0
      %p159 = por %p157, %p158
      %p160 = scmp.ne.s32.totalorder %s146, %s147
      %p161 = scmp.eq.s32.totalorder %s49, 3
      %p162 = por %p160, %p161
      %p164 = scmp.ne.s32.totalorder %s147, %s163
      %p165 = scmp.eq.s32.totalorder %s49, 0
      %p166 = por %p164, %p165
      %s167 = ssub.s32 %s51, %s58
      %p168 = scmp.eq.s32.totalorder %s167, 0
      %s170 = sadd.s32 %s169, 1
      %s171 = scalar_select %p168, %s169, %s170
      %p174 = pneg %p168
      %p175 = scmp.eq.s32.totalorder %s43, 3
      %p176 = por %p174, %p175
      %p177 = scmp.ne.s32.totalorder %s169, %s172
      %p178 = scmp.eq.s32.totalorder %s43, 0
      %p179 = por %p177, %p178
      %p180 = scmp.ne.s32.totalorder %s169, %s172
      %p181 = scmp.eq.s32.totalorder %s48, 3
      %p182 = por %p180, %p181
      %p183 = scmp.ne.s32.totalorder %s172, %s173
      %p184 = scmp.eq.s32.totalorder %s48, 0
      %p185 = por %p183, %p184
      %p186 = scmp.ne.s32.totalorder %s172, %s173
      %p187 = scmp.eq.s32.totalorder %s49, 3
      %p188 = por %p186, %p187
      %p190 = scmp.ne.s32.totalorder %s173, %s189
      %p191 = scmp.eq.s32.totalorder %s49, 0
      %p192 = por %p190, %p191
      %s193 = ssub.s32 %s51, %s58
      %p194 = scmp.eq.s32.totalorder %s193, 0
      %s196 = sadd.s32 %s195, 1
      %s197 = scalar_select %p194, %s195, %s196
      %p200 = pneg %p194
      %p201 = scmp.eq.s32.totalorder %s43, 3
      %p202 = por %p200, %p201
      %p203 = scmp.ne.s32.totalorder %s195, %s198
      %p204 = scmp.eq.s32.totalorder %s43, 0
      %p205 = por %p203, %p204
      %p206 = scmp.ne.s32.totalorder %s195, %s198
      %p207 = scmp.eq.s32.totalorder %s48, 3
      %p208 = por %p206, %p207
      %p209 = scmp.ne.s32.totalorder %s198, %s199
      %p210 = scmp.eq.s32.totalorder %s48, 0
      %p211 = por %p209, %p210
      %p212 = scmp.ne.s32.totalorder %s198, %s199
      %p213 = scmp.eq.s32.totalorder %s49, 3
      %p214 = por %p212, %p213
      %p216 = scmp.ne.s32.totalorder %s199, %s215
      %p217 = scmp.eq.s32.totalorder %s49, 0
      %p218 = por %p216, %p217
      %s219 = ssub.s32 %s51, %s58
      %p220 = scmp.eq.s32.totalorder %s219, 0
      %s222 = sadd.s32 %s221, 1
      %s223 = scalar_select %p220, %s221, %s222
      %p226 = pneg %p220
      %p227 = scmp.eq.s32.totalorder %s43, 3
      %p228 = por %p226, %p227
      %p229 = scmp.ne.s32.totalorder %s221, %s224
      %p230 = scmp.eq.s32.totalorder %s43, 0
      %p231 = por %p229, %p230
      %p232 = scmp.ne.s32.totalorder %s221, %s224
      %p233 = scmp.eq.s32.totalorder %s48, 3
      %p234 = por %p232, %p233
      %p235 = scmp.ne.s32.totalorder %s224, %s225
      %p236 = scmp.eq.s32.totalorder %s48, 0
      %p237 = por %p235, %p236
      %p238 = scmp.ne.s32.totalorder %s224, %s225
      %p239 = scmp.eq.s32.totalorder %s49, 3
      %p240 = por %p238, %p239
      %p242 = scmp.ne.s32.totalorder %s225, %s241
      %p243 = scmp.eq.s32.totalorder %s49, 0
      %p244 = por %p242, %p243
      %s245 = ssub.s32 %s51, %s58
      %p246 = scmp.eq.s32.totalorder %s245, 0
      %s248 = sadd.s32 %s247, 1
      %s249 = scalar_select %p246, %s247, %s248
      %p252 = pneg %p246
      %p253 = scmp.eq.s32.totalorder %s43, 3
      %p254 = por %p252, %p253
      %p255 = scmp.ne.s32.totalorder %s247, %s250
      %p256 = scmp.eq.s32.totalorder %s43, 0
      %p257 = por %p255, %p256
      %p258 = scmp.ne.s32.totalorder %s247, %s250
      %p259 = scmp.eq.s32.totalorder %s48, 3
      %p260 = por %p258, %p259
      %p261 = scmp.ne.s32.totalorder %s250, %s251
      %p262 = scmp.eq.s32.totalorder %s48, 0
      %p263 = por %p261, %p262
      %p264 = scmp.ne.s32.totalorder %s250, %s251
      %p265 = scmp.eq.s32.totalorder %s49, 3
      %p266 = por %p264, %p265
      %p268 = scmp.ne.s32.totalorder %s251, %s267
      %p269 = scmp.eq.s32.totalorder %s49, 0
      %p270 = por %p268, %p269
      %s271 = ssub.s32 %s51, %s58
      %p272 = scmp.eq.s32.totalorder %s271, 0
      %s274 = sadd.s32 %s273, 1
      %s275 = scalar_select %p272, %s273, %s274
      %p278 = pneg %p272
      %p279 = scmp.eq.s32.totalorder %s43, 3
      %p280 = por %p278, %p279
      %p281 = scmp.ne.s32.totalorder %s273, %s276
      %p282 = scmp.eq.s32.totalorder %s43, 0
      %p283 = por %p281, %p282
      %p284 = scmp.ne.s32.totalorder %s273, %s276
      %p285 = scmp.eq.s32.totalorder %s48, 3
      %p286 = por %p284, %p285
      %p287 = scmp.ne.s32.totalorder %s276, %s277
      %p288 = scmp.eq.s32.totalorder %s48, 0
      %p289 = por %p287, %p288
      %p290 = scmp.ne.s32.totalorder %s276, %s277
      %p291 = scmp.eq.s32.totalorder %s49, 3
      %p292 = por %p290, %p291
      %p294 = scmp.ne.s32.totalorder %s277, %s293
      %p295 = scmp.eq.s32.totalorder %s49, 0
      %p296 = por %p294, %p295
      %s297 = ssub.s32 %s51, %s58
      %p298 = scmp.eq.s32.totalorder %s297, 0
      %s300 = sadd.s32 %s299, 1
      %s301 = scalar_select %p298, %s299, %s300
      %p304 = pneg %p298
      %p305 = scmp.eq.s32.totalorder %s43, 3
      %p306 = por %p304, %p305
      %p307 = scmp.ne.s32.totalorder %s299, %s302
      %p308 = scmp.eq.s32.totalorder %s43, 0
      %p309 = por %p307, %p308
      %p310 = scmp.ne.s32.totalorder %s299, %s302
      %p311 = scmp.eq.s32.totalorder %s48, 3
      %p312 = por %p310, %p311
      %p313 = scmp.ne.s32.totalorder %s302, %s303
      %p314 = scmp.eq.s32.totalorder %s48, 0
      %p315 = por %p313, %p314
      %p316 = scmp.ne.s32.totalorder %s302, %s303
      %p317 = scmp.eq.s32.totalorder %s49, 3
      %p318 = por %p316, %p317
      %p320 = scmp.ne.s32.totalorder %s303, %s319
      %p321 = scmp.eq.s32.totalorder %s49, 0
      %p322 = por %p320, %p321
      %s323 = ssub.s32 %s51, %s58
      %p324 = scmp.eq.s32.totalorder %s323, 0
      %s326 = sadd.s32 %s325, 1
      %s327 = scalar_select %p324, %s325, %s326
      %p330 = pneg %p324
      %p331 = scmp.eq.s32.totalorder %s43, 3
      %p332 = por %p330, %p331
      %p333 = scmp.ne.s32.totalorder %s325, %s328
      %p334 = scmp.eq.s32.totalorder %s43, 0
      %p335 = por %p333, %p334
      %p336 = scmp.ne.s32.totalorder %s325, %s328
      %p337 = scmp.eq.s32.totalorder %s48, 3
      %p338 = por %p336, %p337
      %p339 = scmp.ne.s32.totalorder %s328, %s329
      %p340 = scmp.eq.s32.totalorder %s48, 0
      %p341 = por %p339, %p340
      %p342 = scmp.ne.s32.totalorder %s328, %s329
      %p343 = scmp.eq.s32.totalorder %s49, 3
      %p344 = por %p342, %p343
      %p346 = scmp.ne.s32.totalorder %s329, %s345
      %p347 = scmp.eq.s32.totalorder %s49, 0
      %p348 = por %p346, %p347
      %s349 = ssub.s32 %s51, %s58
      %p350 = scmp.eq.s32.totalorder %s349, 0
      %s352 = sadd.s32 %s351, 1
      %s353 = scalar_select %p350, %s351, %s352
      %p356 = pneg %p350
      %p357 = scmp.eq.s32.totalorder %s43, 3
      %p358 = por %p356, %p357
      %p359 = scmp.ne.s32.totalorder %s351, %s354
      %p360 = scmp.eq.s32.totalorder %s43, 0
      %p361 = por %p359, %p360
      %p362 = scmp.ne.s32.totalorder %s351, %s354
      %p363 = scmp.eq.s32.totalorder %s48, 3
      %p364 = por %p362, %p363
      %p365 = scmp.ne.s32.totalorder %s354, %s355
      %p366 = scmp.eq.s32.totalorder %s48, 0
      %p367 = por %p365, %p366
      %p368 = scmp.ne.s32.totalorder %s354, %s355
      %p369 = scmp.eq.s32.totalorder %s49, 3
      %p370 = por %p368, %p369
      %p372 = scmp.ne.s32.totalorder %s355, %s371
      %p373 = scmp.eq.s32.totalorder %s49, 0
      %p374 = por %p372, %p373
      %s375 = ssub.s32 %s51, %s58
      %p376 = scmp.eq.s32.totalorder %s375, 0
      %s378 = sadd.s32 %s377, 1
      %s379 = scalar_select %p376, %s377, %s378
      %p382 = pneg %p376
      %p383 = scmp.eq.s32.totalorder %s43, 3
      %p384 = por %p382, %p383
      %p385 = scmp.ne.s32.totalorder %s377, %s380
      %p386 = scmp.eq.s32.totalorder %s43, 0
      %p387 = por %p385, %p386
      %p388 = scmp.ne.s32.totalorder %s377, %s380
      %p389 = scmp.eq.s32.totalorder %s48, 3
      %p390 = por %p388, %p389
      %p391 = scmp.ne.s32.totalorder %s380, %s381
      %p392 = scmp.eq.s32.totalorder %s48, 0
      %p393 = por %p391, %p392
      %p394 = scmp.ne.s32.totalorder %s380, %s381
      %p395 = scmp.eq.s32.totalorder %s49, 3
      %p396 = por %p394, %p395
      %p398 = scmp.ne.s32.totalorder %s381, %s397
      %p399 = scmp.eq.s32.totalorder %s49, 0
      %p400 = por %p398, %p399
      %s401 = ssub.s32 %s51, %s58
      %p402 = scmp.eq.s32.totalorder %s401, 0
      %s404 = sadd.s32 %s403, 1
      %s405 = scalar_select %p402, %s403, %s404
      %p408 = pneg %p402
      %p409 = scmp.eq.s32.totalorder %s43, 3
      %p410 = por %p408, %p409
      %p411 = scmp.ne.s32.totalorder %s403, %s406
      %p412 = scmp.eq.s32.totalorder %s43, 0
      %p413 = por %p411, %p412
      %p414 = scmp.ne.s32.totalorder %s403, %s406
      %p415 = scmp.eq.s32.totalorder %s48, 3
      %p416 = por %p414, %p415
      %p417 = scmp.ne.s32.totalorder %s406, %s407
      %p418 = scmp.eq.s32.totalorder %s48, 0
      %p419 = por %p417, %p418
      %p420 = scmp.ne.s32.totalorder %s406, %s407
      %p421 = scmp.eq.s32.totalorder %s49, 3
      %p422 = por %p420, %p421
      %p424 = scmp.ne.s32.totalorder %s407, %s423
      %p425 = scmp.eq.s32.totalorder %s49, 0
      %p426 = por %p424, %p425
      %s428 = sadd.s32 %s427, 1
      %p431 = scmp.eq.s32.totalorder %s43, 3
      %p432 = scmp.ne.s32.totalorder %s427, %s429
      %p433 = scmp.eq.s32.totalorder %s43, 0
      %p434 = por %p432, %p433
      %p435 = scmp.ne.s32.totalorder %s427, %s429
      %p436 = scmp.eq.s32.totalorder %s48, 3
      %p437 = por %p435, %p436
      %p438 = scmp.ne.s32.totalorder %s429, %s430
      %p439 = scmp.eq.s32.totalorder %s48, 0
      %p440 = por %p438, %p439
      %p441 = scmp.ne.s32.totalorder %s429, %s430
      %p442 = scmp.eq.s32.totalorder %s49, 3
      %p443 = por %p441, %p442
      %p445 = scmp.ne.s32.totalorder %s430, %s444
      %p446 = scmp.eq.s32.totalorder %s49, 0
      %p447 = por %p445, %p446
      %s449 = sadd.s32 %s448, 1
      %p452 = scmp.eq.s32.totalorder %s43, 3
      %p453 = scmp.ne.s32.totalorder %s448, %s450
      %p454 = scmp.eq.s32.totalorder %s43, 0
      %p455 = por %p453, %p454
      %p456 = scmp.ne.s32.totalorder %s448, %s450
      %p457 = scmp.eq.s32.totalorder %s48, 3
      %p458 = por %p456, %p457
      %p459 = scmp.ne.s32.totalorder %s450, %s451
      %p460 = scmp.eq.s32.totalorder %s48, 0
      %p461 = por %p459, %p460
      %p462 = scmp.ne.s32.totalorder %s450, %s451
      %p463 = scmp.eq.s32.totalorder %s49, 3
      %p464 = por %p462, %p463
      %p466 = scmp.ne.s32.totalorder %s451, %s465
      %p467 = scmp.eq.s32.totalorder %s49, 0
      %p468 = por %p466, %p467
      %s469 = ssub.s32 %s50, %s62
      %p470 = scmp.eq.s32.totalorder %s469, 0
      %s472 = sadd.s32 %s471, 1
      %s473 = scalar_select %p470, %s471, %s472
      %p476 = pneg %p470
      %p477 = scmp.eq.s32.totalorder %s43, 3
      %p478 = por %p476, %p477
      %p479 = scmp.ne.s32.totalorder %s471, %s474
      %p480 = scmp.eq.s32.totalorder %s43, 0
      %p481 = por %p479, %p480
      %p482 = scmp.ne.s32.totalorder %s471, %s474
      %p483 = scmp.eq.s32.totalorder %s48, 3
      %p484 = por %p482, %p483
      %p485 = scmp.ne.s32.totalorder %s474, %s475
      %p486 = scmp.eq.s32.totalorder %s48, 0
      %p487 = por %p485, %p486
      %p488 = scmp.ne.s32.totalorder %s474, %s475
      %p489 = scmp.eq.s32.totalorder %s49, 3
      %p490 = por %p488, %p489
      %p492 = scmp.ne.s32.totalorder %s475, %s491
      %p493 = scmp.eq.s32.totalorder %s49, 0
      %p494 = por %p492, %p493
      %p495 = scmp.le.s32.totalorder 1, %s43
      %p496 = scmp.lt.s32.totalorder %s43, 5
      %p497 = pnand %p495, %p496
      %p498 = pneg %p497
      // Predicated region
      $region9: #{tpu_custom_call.1} parent=5 // pred_check
        _
      $region10: #{tpu_custom_call.1} parent=5 // pred_check_branch
        %500 = sbr.rel (%p497) target = $region12
      $region11: #{tpu_custom_call.1} parent=5 // pred_region
        %s501 = ssub.s32 %s43, 1
        // Predicated region
        $region13: #{tpu_custom_call.1} parent=11 // pred_check
          %p502 = pneg %p440
        $region14: #{tpu_custom_call.1} parent=11 // pred_check_branch
          %504 = sbr.rel (%p502) target = $region16
        $region15: #{tpu_custom_call.1} parent=11 // pred_region
          _
        $region16: #{tpu_custom_call.1} parent=11 // pred_fallthru
          _
        // Predicated region
        $region17: #{tpu_custom_call.1} parent=11 // pred_check
          %p505 = pneg %p461
        $region18: #{tpu_custom_call.1} parent=11 // pred_check_branch
          %507 = sbr.rel (%p505) target = $region20
        $region19: #{tpu_custom_call.1} parent=11 // pred_region
          _
        $region20: #{tpu_custom_call.1} parent=11 // pred_fallthru
          _
      $region12: #{tpu_custom_call.1} parent=5 // pred_fallthru
        _
      %p508 = scmp.lt.s32.totalorder %s43, 4
      // Predicated region
      $region21: #{tpu_custom_call.1} parent=5 // pred_check
        %p509 = pneg %p508
      $region22: #{tpu_custom_call.1} parent=5 // pred_check_branch
        %511 = sbr.rel (%p509) target = $region24
      $region23: #{tpu_custom_call.1} parent=5 // pred_region
        // Predicated region
        $region25: #{tpu_custom_call.1} parent=23 // pred_check
          %p512 = pneg %p75
        $region26: #{tpu_custom_call.1} parent=23 // pred_check_branch
          %514 = sbr.rel (%p512) target = $region28
        $region27: #{tpu_custom_call.1} parent=23 // pred_region
          %s515 = sand.u32 %s65, 1
          %s516 = scalar_lea.sflag [#allocation3], %s515
          %s517 = sand.u32 %s65, 1
          %s518 = smul.addr %s517, 8
          %s519 = scalar_lea.vmem [#allocation2], %s518
          %521 = vsyncadd %s516, 0
          %s522 = smul.addr %s50, 8
          %s523 = scalar_lea.hbm %s0, %s522
          %s525 = sshll.u32 %s523, 4
          %s526 = int_to_ptr.hbm [resolvable:$true] %s525
          %s527 = sshll.u32 %s519, 4
          %s528 = int_to_ptr.vmem [resolvable:$true] %s527
          %530 = dma.hbm_to_vmem [thread:$0]  %s526, 128, %s528, %s516
        $region28: #{tpu_custom_call.1} parent=23 // pred_fallthru
          _
        // Predicated region
        $region29: #{tpu_custom_call.1} parent=23 // pred_check
          %p531 = pneg %p101
        $region30: #{tpu_custom_call.1} parent=23 // pred_check_branch
          %533 = sbr.rel (%p531) target = $region32
        $region31: #{tpu_custom_call.1} parent=23 // pred_region
          %s534 = sand.u32 %s43, 1
          %s535 = scalar_lea.sflag [#allocation6], %s534
          %s536 = sand.u32 %s91, 1
          %s537 = scalar_lea.vmem [#allocation5], %s536
          %539 = vsyncadd %s535, 0
          %s540 = scalar_lea.hbm %s1, %s50
          %s542 = sshll.u32 %s540, 4
          %s543 = int_to_ptr.hbm [resolvable:$true] %s542
          %s544 = sshll.u32 %s537, 4
          %s545 = int_to_ptr.vmem [resolvable:$true] %s544
          %547 = dma.hbm_to_vmem [thread:$0]  %s543, 16, %s545, %s535
        $region32: #{tpu_custom_call.1} parent=23 // pred_fallthru
          _
        // Predicated region
        $region33: #{tpu_custom_call.1} parent=23 // pred_check
          %p548 = pneg %p127
        $region34: #{tpu_custom_call.1} parent=23 // pred_check_branch
          %550 = sbr.rel (%p548) target = $region36
        $region35: #{tpu_custom_call.1} parent=23 // pred_region
          %s551 = sand.u32 %s43, 1
          %s552 = scalar_lea.sflag [#allocation6], %s551
          %s553 = sand.u32 %s117, 1
          %s554 = scalar_lea.vmem [#allocation7], %s553
          %556 = vsyncadd %s552, 0
          %s557 = scalar_lea.hbm %s2, %s51
          %s559 = sshll.u32 %s557, 4
          %s560 = int_to_ptr.hbm [resolvable:$true] %s559
          %s561 = sshll.u32 %s554, 4
          %s562 = int_to_ptr.vmem [resolvable:$true] %s561
          %564 = dma.hbm_to_vmem [thread:$0]  %s560, 16, %s562, %s552
        $region36: #{tpu_custom_call.1} parent=23 // pred_fallthru
          _
        // Predicated region
        $region37: #{tpu_custom_call.1} parent=23 // pred_check
          %p565 = pneg %p153
        $region38: #{tpu_custom_call.1} parent=23 // pred_check_branch
          %567 = sbr.rel (%p565) target = $region40
        $region39: #{tpu_custom_call.1} parent=23 // pred_region
          %p568 = scmp.lt.s32.totalorder %s51, 1
          %s569 = scalar_select %p568, %s51, 1
          %s570 = scalar_lea.vmem %s3, %s569
        $region40: #{tpu_custom_call.1} parent=23 // pred_fallthru
          _
        // Predicated region
        $region41: #{tpu_custom_call.1} parent=23 // pred_check
          %p571 = pneg %p179
        $region42: #{tpu_custom_call.1} parent=23 // pred_check_branch
          %573 = sbr.rel (%p571) target = $region44
        $region43: #{tpu_custom_call.1} parent=23 // pred_region
          %s574 = sand.u32 %s43, 1
          %s575 = scalar_lea.sflag [#allocation9], %s574
          %s576 = sand.u32 %s169, 1
          %s577 = smul.addr %s576, 192
          %s578 = scalar_lea.vmem [#allocation8], %s577
          %580 = vsyncadd %s575, 0
          %s581 = smul.addr %s51, 48
          %s582 = smul.addr %s581, 4
          %s583 = scalar_lea.hbm %s4, %s582
          %s584 = sshll.u32 %s583, 4
          %s585 = int_to_ptr.hbm [resolvable:$true] %s584
          %s586 = sshll.u32 %s578, 4
          %s587 = int_to_ptr.vmem [resolvable:$true] %s586
          %592 = dma.hbm_to_vmem [thread:$0]  %s585, 3072, %s587, %s575, 192, 192, 12
        $region44: #{tpu_custom_call.1} parent=23 // pred_fallthru
          _
        // Predicated region
        $region45: #{tpu_custom_call.1} parent=23 // pred_check
          %p593 = pneg %p205
        $region46: #{tpu_custom_call.1} parent=23 // pred_check_branch
          %595 = sbr.rel (%p593) target = $region48
        $region47: #{tpu_custom_call.1} parent=23 // pred_region
          %s596 = sand.u32 %s43, 1
          %s597 = scalar_lea.sflag [#allocation9], %s596
          %s598 = sand.u32 %s195, 1
          %s599 = smul.addr %s598, 3
          %s600 = scalar_lea.vmem [#allocation10], %s599
          %602 = vsyncadd %s597, 0
          %s603 = smul.addr %s51, 3
          %s604 = scalar_lea.hbm %s5, %s603
          %s606 = sshll.u32 %s604, 4
          %s607 = int_to_ptr.hbm [resolvable:$true] %s606
          %s608 = sshll.u32 %s600, 4
          %s609 = int_to_ptr.vmem [resolvable:$true] %s608
          %611 = dma.hbm_to_vmem [thread:$0]  %s607, 48, %s609, %s597
        $region48: #{tpu_custom_call.1} parent=23 // pred_fallthru
          _
        // Predicated region
        $region49: #{tpu_custom_call.1} parent=23 // pred_check
          %p612 = pneg %p231
        $region50: #{tpu_custom_call.1} parent=23 // pred_check_branch
          %614 = sbr.rel (%p612) target = $region52
        $region51: #{tpu_custom_call.1} parent=23 // pred_region
          %s615 = sand.u32 %s43, 1
          %s616 = scalar_lea.sflag [#allocation12], %s615
          %s617 = sand.u32 %s221, 1
          %s618 = smul.addr %s617, 64
          %s619 = scalar_lea.vmem [#allocation11], %s618
          %621 = vsyncadd %s616, 0
          %s622 = smul.addr %s51, 16
          %s623 = smul.addr %s622, 4
          %s624 = scalar_lea.hbm %s6, %s623
          %s625 = sshll.u32 %s624, 4
          %s626 = int_to_ptr.hbm [resolvable:$true] %s625
          %s627 = sshll.u32 %s619, 4
          %s628 = int_to_ptr.vmem [resolvable:$true] %s627
          %633 = dma.hbm_to_vmem [thread:$0]  %s626, 1024, %s628, %s616, 64, 64, 4
        $region52: #{tpu_custom_call.1} parent=23 // pred_fallthru
          _
        // Predicated region
        $region53: #{tpu_custom_call.1} parent=23 // pred_check
          %p634 = pneg %p257
        $region54: #{tpu_custom_call.1} parent=23 // pred_check_branch
          %636 = sbr.rel (%p634) target = $region56
        $region55: #{tpu_custom_call.1} parent=23 // pred_region
          %s637 = sand.u32 %s43, 1
          %s638 = scalar_lea.sflag [#allocation12], %s637
          %s639 = sand.u32 %s247, 1
          %s640 = scalar_lea.vmem [#allocation13], %s639
          %642 = vsyncadd %s638, 0
          %s643 = scalar_lea.hbm %s7, %s51
          %s645 = sshll.u32 %s643, 4
          %s646 = int_to_ptr.hbm [resolvable:$true] %s645
          %s647 = sshll.u32 %s640, 4
          %s648 = int_to_ptr.vmem [resolvable:$true] %s647
          %650 = dma.hbm_to_vmem [thread:$0]  %s646, 16, %s648, %s638
        $region56: #{tpu_custom_call.1} parent=23 // pred_fallthru
          _
        // Predicated region
        $region57: #{tpu_custom_call.1} parent=23 // pred_check
          %p651 = pneg %p283
        $region58: #{tpu_custom_call.1} parent=23 // pred_check_branch
          %653 = sbr.rel (%p651) target = $region60
        $region59: #{tpu_custom_call.1} parent=23 // pred_region
          %s654 = sand.u32 %s43, 1
          %s655 = scalar_lea.sflag [#allocation15], %s654
          %s656 = sand.u32 %s273, 1
          %s657 = scalar_lea.vmem [#allocation14], %s656
          %659 = vsyncadd %s655, 0
          %s660 = scalar_lea.hbm %s8, %s51
          %s662 = sshll.u32 %s660, 4
          %s663 = int_to_ptr.hbm [resolvable:$true] %s662
          %s664 = sshll.u32 %s657, 4
          %s665 = int_to_ptr.vmem [resolvable:$true] %s664
          %667 = dma.hbm_to_vmem [thread:$0]  %s663, 16, %s665, %s655
        $region60: #{tpu_custom_call.1} parent=23 // pred_fallthru
          _
        // Predicated region
        $region61: #{tpu_custom_call.1} parent=23 // pred_check
          %p668 = pneg %p309
        $region62: #{tpu_custom_call.1} parent=23 // pred_check_branch
          %670 = sbr.rel (%p668) target = $region64
        $region63: #{tpu_custom_call.1} parent=23 // pred_region
          %s671 = sand.u32 %s43, 1
          %s672 = scalar_lea.sflag [#allocation15], %s671
          %s673 = sand.u32 %s299, 1
          %s674 = scalar_lea.vmem [#allocation16], %s673
          %676 = vsyncadd %s672, 0
          %s677 = scalar_lea.hbm %s9, %s51
          %s679 = sshll.u32 %s677, 4
          %s680 = int_to_ptr.hbm [resolvable:$true] %s679
          %s681 = sshll.u32 %s674, 4
          %s682 = int_to_ptr.vmem [resolvable:$true] %s681
          %684 = dma.hbm_to_vmem [thread:$0]  %s680, 16, %s682, %s672
        $region64: #{tpu_custom_call.1} parent=23 // pred_fallthru
          _
        // Predicated region
        $region65: #{tpu_custom_call.1} parent=23 // pred_check
          %p685 = pneg %p335
        $region66: #{tpu_custom_call.1} parent=23 // pred_check_branch
          %687 = sbr.rel (%p685) target = $region68
        $region67: #{tpu_custom_call.1} parent=23 // pred_region
          %s688 = sand.u32 %s43, 1
          %s689 = scalar_lea.sflag [#allocation18], %s688
          %s690 = sand.u32 %s325, 1
          %s691 = smul.addr %s690, 256
          %s692 = scalar_lea.vmem [#allocation17], %s691
          %694 = vsyncadd %s689, 0
          %s695 = smul.addr %s51, 64
          %s696 = smul.addr %s695, 4
          %s697 = scalar_lea.hbm %s10, %s696
          %s698 = sshll.u32 %s697, 4
          %s699 = int_to_ptr.hbm [resolvable:$true] %s698
          %s700 = sshll.u32 %s692, 4
          %s701 = int_to_ptr.vmem [resolvable:$true] %s700
          %706 = dma.hbm_to_vmem [thread:$0]  %s699, 4096, %s701, %s689, 256, 256, 16
        $region68: #{tpu_custom_call.1} parent=23 // pred_fallthru
          _
        // Predicated region
        $region69: #{tpu_custom_call.1} parent=23 // pred_check
          %p707 = pneg %p361
        $region70: #{tpu_custom_call.1} parent=23 // pred_check_branch
          %709 = sbr.rel (%p707) target = $region72
        $region71: #{tpu_custom_call.1} parent=23 // pred_region
          %p710 = scmp.lt.s32.totalorder %s51, 1
          %s711 = scalar_select %p710, %s51, 1
          %s712 = smul.addr %s711, 4
          %s713 = scalar_lea.vmem %s11, %s712
        $region72: #{tpu_custom_call.1} parent=23 // pred_fallthru
          _
        // Predicated region
        $region73: #{tpu_custom_call.1} parent=23 // pred_check
          %p714 = pneg %p387
        $region74: #{tpu_custom_call.1} parent=23 // pred_check_branch
          %716 = sbr.rel (%p714) target = $region76
        $region75: #{tpu_custom_call.1} parent=23 // pred_region
          %s717 = sand.u32 %s43, 1
          %s718 = scalar_lea.sflag [#allocation18], %s717
          %s719 = sand.u32 %s377, 1
          %s720 = smul.addr %s719, 256
          %s721 = scalar_lea.vmem [#allocation19], %s720
          %723 = vsyncadd %s718, 0
          %s724 = smul.addr %s51, 64
          %s725 = smul.addr %s724, 4
          %s726 = scalar_lea.hbm %s12, %s725
          %s727 = sshll.u32 %s726, 4
          %s728 = int_to_ptr.hbm [resolvable:$true] %s727
          %s729 = sshll.u32 %s721, 4
          %s730 = int_to_ptr.vmem [resolvable:$true] %s729
          %735 = dma.hbm_to_vmem [thread:$0]  %s728, 4096, %s730, %s718, 64, 64, 4
        $region76: #{tpu_custom_call.1} parent=23 // pred_fallthru
          _
        // Predicated region
        $region77: #{tpu_custom_call.1} parent=23 // pred_check
          %p736 = pneg %p413
        $region78: #{tpu_custom_call.1} parent=23 // pred_check_branch
          %738 = sbr.rel (%p736) target = $region80
        $region79: #{tpu_custom_call.1} parent=23 // pred_region
          %p739 = scmp.lt.s32.totalorder %s51, 1
          %s740 = scalar_select %p739, %s51, 1
          %s741 = scalar_lea.vmem %s13, %s740
        $region80: #{tpu_custom_call.1} parent=23 // pred_fallthru
          _
      $region24: #{tpu_custom_call.1} parent=5 // pred_fallthru
        _
      %p742 = scmp.le.s32.totalorder 1, %s43
      %p743 = scmp.lt.s32.totalorder %s43, 5
      %p744 = pnand %p742, %p743
      %p745 = pneg %p744
      // Predicated region
      $region81: #{tpu_custom_call.1} parent=5 // pred_check
        _
      $region82: #{tpu_custom_call.1} parent=5 // pred_check_branch
        %747 = sbr.rel (%p744) target = $region84
      $region83: #{tpu_custom_call.1} parent=5 // pred_region
        %s748 = ssub.s32 %s43, 1
        %s749 = sand.u32 %s68, 1
        %s750 = scalar_lea.sflag [#allocation3], %s749
        %s751 = sand.u32 %s68, 1
        %s752 = smul.addr %s751, 8
        %s753 = scalar_lea.vmem [#allocation2], %s752
        // Predicated region
        $region85: #{tpu_custom_call.1} parent=83 // pred_check
          %p754 = pneg %p81
        $region86: #{tpu_custom_call.1} parent=83 // pred_check_branch
          %756 = sbr.rel (%p754) target = $region88
        $region87: #{tpu_custom_call.1} parent=83 // pred_region
          %758 = dma.done %s750, 128
        $region88: #{tpu_custom_call.1} parent=83 // pred_fallthru
          _
        %s759 = sand.u32 %s48, 1
        %s760 = scalar_lea.sflag [#allocation6], %s759
        %s761 = sand.u32 %s94, 1
        %s762 = scalar_lea.vmem [#allocation5], %s761
        // Predicated region
        $region89: #{tpu_custom_call.1} parent=83 // pred_check
          %p763 = pneg %p107
        $region90: #{tpu_custom_call.1} parent=83 // pred_check_branch
          %765 = sbr.rel (%p763) target = $region92
        $region91: #{tpu_custom_call.1} parent=83 // pred_region
          %767 = dma.done %s760, 16
        $region92: #{tpu_custom_call.1} parent=83 // pred_fallthru
          _
        %s768 = sand.u32 %s48, 1
        %s769 = scalar_lea.sflag [#allocation6], %s768
        %s770 = sand.u32 %s120, 1
        %s771 = scalar_lea.vmem [#allocation7], %s770
        // Predicated region
        $region93: #{tpu_custom_call.1} parent=83 // pred_check
          %p772 = pneg %p133
        $region94: #{tpu_custom_call.1} parent=83 // pred_check_branch
          %774 = sbr.rel (%p772) target = $region96
        $region95: #{tpu_custom_call.1} parent=83 // pred_region
          %776 = dma.done %s769, 16
        $region96: #{tpu_custom_call.1} parent=83 // pred_fallthru
          _
        %s777 = sand.u32 %s48, 1
        %s778 = scalar_lea.sflag [#allocation9], %s777
        %s779 = sand.u32 %s172, 1
        %s780 = smul.addr %s779, 192
        %s781 = scalar_lea.vmem [#allocation8], %s780
        // Predicated region
        $region97: #{tpu_custom_call.1} parent=83 // pred_check
          %p782 = pneg %p185
        $region98: #{tpu_custom_call.1} parent=83 // pred_check_branch
          %784 = sbr.rel (%p782) target = $region100
        $region99: #{tpu_custom_call.1} parent=83 // pred_region
          %786 = dma.done %s778, 3072
        $region100: #{tpu_custom_call.1} parent=83 // pred_fallthru
          _
        %s787 = sand.u32 %s48, 1
        %s788 = scalar_lea.sflag [#allocation9], %s787
        %s789 = sand.u32 %s198, 1
        %s790 = smul.addr %s789, 3
        %s791 = scalar_lea.vmem [#allocation10], %s790
        // Predicated region
        $region101: #{tpu_custom_call.1} parent=83 // pred_check
          %p792 = pneg %p211
        $region102: #{tpu_custom_call.1} parent=83 // pred_check_branch
          %794 = sbr.rel (%p792) target = $region104
        $region103: #{tpu_custom_call.1} parent=83 // pred_region
          %796 = dma.done %s788, 48
        $region104: #{tpu_custom_call.1} parent=83 // pred_fallthru
          _
        %s797 = sand.u32 %s48, 1
        %s798 = scalar_lea.sflag [#allocation12], %s797
        %s799 = sand.u32 %s224, 1
        %s800 = smul.addr %s799, 64
        %s801 = scalar_lea.vmem [#allocation11], %s800
        // Predicated region
        $region105: #{tpu_custom_call.1} parent=83 // pred_check
          %p802 = pneg %p237
        $region106: #{tpu_custom_call.1} parent=83 // pred_check_branch
          %804 = sbr.rel (%p802) target = $region108
        $region107: #{tpu_custom_call.1} parent=83 // pred_region
          %806 = dma.done %s798, 1024
        $region108: #{tpu_custom_call.1} parent=83 // pred_fallthru
          _
        %s807 = sand.u32 %s48, 1
        %s808 = scalar_lea.sflag [#allocation12], %s807
        %s809 = sand.u32 %s250, 1
        %s810 = scalar_lea.vmem [#allocation13], %s809
        // Predicated region
        $region109: #{tpu_custom_call.1} parent=83 // pred_check
          %p811 = pneg %p263
        $region110: #{tpu_custom_call.1} parent=83 // pred_check_branch
          %813 = sbr.rel (%p811) target = $region112
        $region111: #{tpu_custom_call.1} parent=83 // pred_region
          %815 = dma.done %s808, 16
        $region112: #{tpu_custom_call.1} parent=83 // pred_fallthru
          _
        %s816 = sand.u32 %s48, 1
        %s817 = scalar_lea.sflag [#allocation15], %s816
        %s818 = sand.u32 %s276, 1
        %s819 = scalar_lea.vmem [#allocation14], %s818
        // Predicated region
        $region113: #{tpu_custom_call.1} parent=83 // pred_check
          %p820 = pneg %p289
        $region114: #{tpu_custom_call.1} parent=83 // pred_check_branch
          %822 = sbr.rel (%p820) target = $region116
        $region115: #{tpu_custom_call.1} parent=83 // pred_region
          %824 = dma.done %s817, 16
        $region116: #{tpu_custom_call.1} parent=83 // pred_fallthru
          _
        %s825 = sand.u32 %s48, 1
        %s826 = scalar_lea.sflag [#allocation15], %s825
        %s827 = sand.u32 %s302, 1
        %s828 = scalar_lea.vmem [#allocation16], %s827
        // Predicated region
        $region117: #{tpu_custom_call.1} parent=83 // pred_check
          %p829 = pneg %p315
        $region118: #{tpu_custom_call.1} parent=83 // pred_check_branch
          %831 = sbr.rel (%p829) target = $region120
        $region119: #{tpu_custom_call.1} parent=83 // pred_region
          %833 = dma.done %s826, 16
        $region120: #{tpu_custom_call.1} parent=83 // pred_fallthru
          _
        %s834 = sand.u32 %s48, 1
        %s835 = scalar_lea.sflag [#allocation18], %s834
        %s836 = sand.u32 %s328, 1
        %s837 = smul.addr %s836, 256
        %s838 = scalar_lea.vmem [#allocation17], %s837
        // Predicated region
        $region121: #{tpu_custom_call.1} parent=83 // pred_check
          %p839 = pneg %p341
        $region122: #{tpu_custom_call.1} parent=83 // pred_check_branch
          %841 = sbr.rel (%p839) target = $region124
        $region123: #{tpu_custom_call.1} parent=83 // pred_region
          %843 = dma.done %s835, 4096
        $region124: #{tpu_custom_call.1} parent=83 // pred_fallthru
          _
        %s844 = sand.u32 %s48, 1
        %s845 = scalar_lea.sflag [#allocation18], %s844
        %s846 = sand.u32 %s380, 1
        %s847 = smul.addr %s846, 256
        %s848 = scalar_lea.vmem [#allocation19], %s847
        // Predicated region
        $region125: #{tpu_custom_call.1} parent=83 // pred_check
          %p849 = pneg %p393
        $region126: #{tpu_custom_call.1} parent=83 // pred_check_branch
          %851 = sbr.rel (%p849) target = $region128
        $region127: #{tpu_custom_call.1} parent=83 // pred_region
          %853 = dma.done %s845, 4096
        $region128: #{tpu_custom_call.1} parent=83 // pred_fallthru
          _
        %s854 = sand.u32 %s68, 1
        %s855 = scalar_lea.sflag [#allocation3], %s854
        %s856 = sand.u32 %s68, 1
        %s857 = smul.addr %s856, 8
        %s858 = scalar_lea.vmem [#allocation2], %s857
        %p859 = pneg %p81
        %p860 = pneg %p78
        %s861 = sand.u32 %s48, 1
        %s862 = scalar_lea.sflag [#allocation6], %s861
        %s863 = sand.u32 %s94, 1
        %s864 = scalar_lea.vmem [#allocation5], %s863
        %p865 = pneg %p107
        %p866 = pneg %p104
        %s867 = sand.u32 %s48, 1
        %s868 = scalar_lea.sflag [#allocation6], %s867
        %s869 = sand.u32 %s120, 1
        %s870 = scalar_lea.vmem [#allocation7], %s869
        %p871 = pneg %p133
        %p872 = pneg %p130
        %p873 = scmp.lt.s32.totalorder %s53, 1
        %s874 = scalar_select %p873, %s53, 1
        %s875 = scalar_lea.vmem %s3, %s874
        %p876 = pneg %p159
        %p877 = pneg %p156
        %s878 = sand.u32 %s48, 1
        %s879 = scalar_lea.sflag [#allocation9], %s878
        %s880 = sand.u32 %s172, 1
        %s881 = smul.addr %s880, 192
        %s882 = scalar_lea.vmem [#allocation8], %s881
        %p883 = pneg %p185
        %p884 = pneg %p182
        %s885 = sand.u32 %s48, 1
        %s886 = scalar_lea.sflag [#allocation9], %s885
        %s887 = sand.u32 %s198, 1
        %s888 = smul.addr %s887, 3
        %s889 = scalar_lea.vmem [#allocation10], %s888
        %p890 = pneg %p211
        %p891 = pneg %p208
        %s892 = sand.u32 %s48, 1
        %s893 = scalar_lea.sflag [#allocation12], %s892
        %s894 = sand.u32 %s224, 1
        %s895 = smul.addr %s894, 64
        %s896 = scalar_lea.vmem [#allocation11], %s895
        %p897 = pneg %p237
        %p898 = pneg %p234
        %s899 = sand.u32 %s48, 1
        %s900 = scalar_lea.sflag [#allocation12], %s899
        %s901 = sand.u32 %s250, 1
        %s902 = scalar_lea.vmem [#allocation13], %s901
        %p903 = pneg %p263
        %p904 = pneg %p260
        %s905 = sand.u32 %s48, 1
        %s906 = scalar_lea.sflag [#allocation15], %s905
        %s907 = sand.u32 %s276, 1
        %s908 = scalar_lea.vmem [#allocation14], %s907
        %p909 = pneg %p289
        %p910 = pneg %p286
        %s911 = sand.u32 %s48, 1
        %s912 = scalar_lea.sflag [#allocation15], %s911
        %s913 = sand.u32 %s302, 1
        %s914 = scalar_lea.vmem [#allocation16], %s913
        %p915 = pneg %p315
        %p916 = pneg %p312
        %s917 = sand.u32 %s48, 1
        %s918 = scalar_lea.sflag [#allocation18], %s917
        %s919 = sand.u32 %s328, 1
        %s920 = smul.addr %s919, 256
        %s921 = scalar_lea.vmem [#allocation17], %s920
        %p922 = pneg %p341
        %p923 = pneg %p338
        %p924 = scmp.lt.s32.totalorder %s53, 1
        %s925 = scalar_select %p924, %s53, 1
        %s926 = smul.addr %s925, 4
        %s927 = scalar_lea.vmem %s11, %s926
        %p928 = pneg %p367
        %p929 = pneg %p364
        %s930 = sand.u32 %s48, 1
        %s931 = scalar_lea.sflag [#allocation18], %s930
        %s932 = sand.u32 %s380, 1
        %s933 = smul.addr %s932, 256
        %s934 = scalar_lea.vmem [#allocation19], %s933
        %p935 = pneg %p393
        %p936 = pneg %p390
        %p937 = scmp.lt.s32.totalorder %s53, 1
        %s938 = scalar_select %p937, %s53, 1
        %s939 = scalar_lea.vmem %s13, %s938
        %p940 = pneg %p419
        %p941 = pneg %p416
        %p942 = pneg %p440
        %p943 = pneg %p437
        %p944 = pneg %p461
        %p945 = pneg %p458
        %p946 = pneg %p487
        %p947 = pneg %p484
        %s948 = sand.u32 %s474, 1
        %s949 = scalar_lea.sflag [#allocation4], %s948
        %s950 = sand.u32 %s474, 1
        %s951 = smul.addr %s950, 8
        %s952 = scalar_lea.vmem [#allocation20], %s951
        %p953 = scmp.lt.s32.totalorder %s53, 1
        %s954 = scalar_select %p953, %s53, 1
        %s955 = scalar_lea.vmem %s3, %s954
        %p956 = scmp.lt.s32.totalorder %s53, 1
        %s957 = scalar_select %p956, %s53, 1
        %s958 = smul.addr %s957, 4
        %s959 = scalar_lea.vmem %s11, %s958
        %p960 = scmp.lt.s32.totalorder %s53, 1
        %s961 = scalar_select %p960, %s53, 1
        %s962 = scalar_lea.vmem %s13, %s961
        %p964 = scmp.eq.s32.totalorder %s53, 0
        // Predicated region
        $region129: #{tpu_custom_call.1} parent=83 // pred_check
          %p965 = pneg %p964
        $region130: #{tpu_custom_call.1} parent=83 // pred_check_branch
          %967 = sbr.rel (%p965) target = $region132
        $region131: #{tpu_custom_call.1} parent=83 // pred_region
          %v968 = vld [vmem:[%s753] sm:$0xff]
          %969 = vst [vmem:[%s952] sm:$0xff] %v968
        $region132: #{tpu_custom_call.1} parent=83 // pred_fallthru
          _
        %v970 = vld [vmem:[%s952] sm:$0xff]
        %v971 = vld [vmem:[%s771] sm:$0x1]
        %v972 = vld [vmem:[%s955] sm:$0x1]
        %973 = vadd.xlane.f32.xlu0 %v970
        %v974 = vpop.xlane.xlu0 %973
        %v975 = vrcp.pop 128.0
        %v976 = vmul.f32 128.0, %v975
        %v977 = vsub.f32 1.0, %v976
        %v978 = vmul.f32 %v975, %v977
        %v979 = vadd.f32 %v975, %v978
        %vm980 = vweird.f32 %v975
        %v981 = vsel %vm980, %v975, %v979
        %v982 = vmul.f32 %v974, %v981
        %v983 = vsub.f32 %v970, %v982
        %v984 = vmul.f32 %v983, %v983
        %985 = vadd.xlane.f32.xlu0 %v984
        %v986 = vpop.xlane.xlu0 %985
        %v987 = vmul.f32 %v986, %v981
        %v988 = vadd.f32 %v987, 1e-05
        %v989 = vrsqrt.pop %v988
        %v990 = vmul.f32 %v989, %v988
        %v991 = vmul.f32 %v990, %v989
        %v992 = vmul.f32 0.5, %v991
        %v993 = vsub.f32 1.5, %v992
        %v994 = vmul.f32 %v989, %v993
        %vm995 = vweird.f32 %v988
        %vm996 = vweird.f32 %v989
        %vm997 = vmor %vm995, %vm996
        %v998 = vsel %vm997, %v989, %v994
        %v999 = vmul.f32 %v983, %v998
        %v1001 = vperm.slane %v971, 0
        %v1003 = vmul.f32 %v999, %v1001
        %v1005 = vperm.slane %v972, 0
        %v1007 = vadd.f32 %v1003, %v1005
        %v1008 = vpack.c.bf16 %v1007, %v1007
        %v1009 = vld [vmem:[%s781] sm:$0xff]
        %v1010 = vld [vmem:[%s781 + $0x8] sm:$0xf]
        %v1011 = vld [vmem:[%s781 + $0xc] sm:$0xff]
        %v1012 = vld [vmem:[%s781 + $0x14] sm:$0xf]
        %v1013 = vld [vmem:[%s781 + $0x18] sm:$0xff]
        %v1014 = vld [vmem:[%s781 + $0x20] sm:$0xf]
        %v1015 = vld [vmem:[%s781 + $0x24] sm:$0xff]
        %v1016 = vld [vmem:[%s781 + $0x2c] sm:$0xf]
        %v1017 = vld [vmem:[%s781 + $0x30] sm:$0xff]
        %v1018 = vld [vmem:[%s781 + $0x38] sm:$0xf]
        %v1019 = vld [vmem:[%s781 + $0x3c] sm:$0xff]
        %v1020 = vld [vmem:[%s781 + $0x44] sm:$0xf]
        %v1021 = vld [vmem:[%s781 + $0x48] sm:$0xff]
        %v1022 = vld [vmem:[%s781 + $0x50] sm:$0xf]
        %v1023 = vld [vmem:[%s781 + $0x54] sm:$0xff]
        %v1024 = vld [vmem:[%s781 + $0x5c] sm:$0xf]
        %v1025 = vld [vmem:[%s781 + $0x60] sm:$0xff]
        %v1026 = vld [vmem:[%s781 + $0x68] sm:$0xf]
        %v1027 = vld [vmem:[%s781 + $0x6c] sm:$0xff]
        %v1028 = vld [vmem:[%s781 + $0x74] sm:$0xf]
        %v1029 = vld [vmem:[%s781 + $0x78] sm:$0xff]
        %v1030 = vld [vmem:[%s781 + $0x80] sm:$0xf]
        %v1031 = vld [vmem:[%s781 + $0x84] sm:$0xff]
        %v1032 = vld [vmem:[%s781 + $0x8c] sm:$0xf]
        %v1033 = vld [vmem:[%s781 + $0x90] sm:$0xff]
        %v1034 = vld [vmem:[%s781 + $0x98] sm:$0xf]
        %v1035 = vld [vmem:[%s781 + $0x9c] sm:$0xff]
        %v1036 = vld [vmem:[%s781 + $0xa4] sm:$0xf]
        %v1037 = vld [vmem:[%s781 + $0xa8] sm:$0xff]
        %v1038 = vld [vmem:[%s781 + $0xb0] sm:$0xf]
        %v1039 = vld [vmem:[%s781 + $0xb4] sm:$0xff]
        %v1040 = vld [vmem:[%s781 + $0xbc] sm:$0xf]
        %v1041 = vld [vmem:[%s791] sm:$0x7]
        %v1043 = vperm.slane %v1041, 0
        %v1044 = vperm.slane %v1041, 1
        %v1045 = vperm.slane %v1041, 2
        %v1081 = vunpack.c.l.b16 %v1009
        %v1082 = vunpack.c.h.b16 %v1009
        %v1083 = vunpack.c.l.b16 %v1010
        %v1084 = vunpack.c.l.b16 %v1011
        %v1085 = vunpack.c.h.b16 %v1011
        %v1086 = vunpack.c.l.b16 %v1012
        %v1087 = vunpack.c.l.b16 %v1013
        %v1088 = vunpack.c.h.b16 %v1013
        %v1089 = vunpack.c.l.b16 %v1014
        %v1090 = vunpack.c.l.b16 %v1015
        %v1091 = vunpack.c.h.b16 %v1015
        %v1092 = vunpack.c.l.b16 %v1016
        %v1093 = vunpack.c.l.b16 %v1017
        %v1094 = vunpack.c.h.b16 %v1017
        %v1095 = vunpack.c.l.b16 %v1018
        %v1096 = vunpack.c.l.b16 %v1019
        %v1097 = vunpack.c.h.b16 %v1019
        %v1098 = vunpack.c.l.b16 %v1020
        %v1099 = vunpack.c.l.b16 %v1021
        %v1100 = vunpack.c.h.b16 %v1021
        %v1101 = vunpack.c.l.b16 %v1022
        %v1102 = vunpack.c.l.b16 %v1023
        %v1103 = vunpack.c.h.b16 %v1023
        %v1104 = vunpack.c.l.b16 %v1024
        %v1105 = vunpack.c.l.b16 %v1025
        %v1106 = vunpack.c.h.b16 %v1025
        %v1107 = vunpack.c.l.b16 %v1026
        %v1108 = vunpack.c.l.b16 %v1027
        %v1109 = vunpack.c.h.b16 %v1027
        %v1110 = vunpack.c.l.b16 %v1028
        %v1111 = vunpack.c.l.b16 %v1029
        %v1112 = vunpack.c.h.b16 %v1029
        %v1113 = vunpack.c.l.b16 %v1030
        %v1114 = vunpack.c.l.b16 %v1031
        %v1115 = vunpack.c.h.b16 %v1031
        %v1116 = vunpack.c.l.b16 %v1032
        %v1117 = vunpack.c.l.b16 %v1033
        %v1118 = vunpack.c.h.b16 %v1033
        %v1119 = vunpack.c.l.b16 %v1034
        %v1120 = vunpack.c.l.b16 %v1035
        %v1121 = vunpack.c.h.b16 %v1035
        %v1122 = vunpack.c.l.b16 %v1036
        %v1123 = vunpack.c.l.b16 %v1037
        %v1124 = vunpack.c.h.b16 %v1037
        %v1125 = vunpack.c.l.b16 %v1038
        %v1126 = vunpack.c.l.b16 %v1039
        %v1127 = vunpack.c.h.b16 %v1039
        %v1128 = vunpack.c.l.b16 %v1040
        %v1129 = vpack.c.b16 %v1084, %v1081
        %v1130 = vpack.c.b16 %v1085, %v1082
        %v1131 = vpack.c.b16 %v1086, %v1083
        %v1132 = vpack.c.b16 %v1090, %v1087
        %v1133 = vpack.c.b16 %v1091, %v1088
        %v1134 = vpack.c.b16 %v1092, %v1089
        %v1135 = vpack.c.b16 %v1096, %v1093
        %v1136 = vpack.c.b16 %v1097, %v1094
        %v1137 = vpack.c.b16 %v1098, %v1095
        %v1138 = vpack.c.b16 %v1102, %v1099
        %v1139 = vpack.c.b16 %v1103, %v1100
        %v1140 = vpack.c.b16 %v1104, %v1101
        %v1141 = vpack.c.b16 %v1108, %v1105
        %v1142 = vpack.c.b16 %v1109, %v1106
        %v1143 = vpack.c.b16 %v1110, %v1107
        %v1144 = vpack.c.b16 %v1114, %v1111
        %v1145 = vpack.c.b16 %v1115, %v1112
        %v1146 = vpack.c.b16 %v1116, %v1113
        %v1147 = vpack.c.b16 %v1120, %v1117
        %v1148 = vpack.c.b16 %v1121, %v1118
        %v1149 = vpack.c.b16 %v1122, %v1119
        %v1150 = vpack.c.b16 %v1126, %v1123
        %v1151 = vpack.c.b16 %v1127, %v1124
        %v1152 = vpack.c.b16 %v1128, %v1125
        %1177 = vmatpush.bf16.msra.mxu0 %v1150
        %1178 = vmatpush.bf16.msra.mxu0 %v1147
        %1179 = vmatpush.bf16.msra.mxu0 %v1144
        %1180 = vmatpush.bf16.msra.mxu0 %v1141
        %1181 = vmatpush.bf16.msra.mxu0 %v1138
        %1182 = vmatpush.bf16.msra.mxu0 %v1135
        %1183 = vmatpush.bf16.msra.mxu0 %v1132
        %1184 = vmatpush.bf16.msra.mxu0 %v1129
        %1185 = vmatmul.bf16.gmra.mxu0 %v1008
        %v1186 = vpop.f32.mrf.mxu0
        %v1187 = vadd.f32 %v1043, %v1186
        %v1188 = vpop.f32.mrf.mxu0
        %1189 = vdwg.mxu0
        %1190 = vmatpush.bf16.msra.mxu0 %v1151
        %1191 = vmatpush.bf16.msra.mxu0 %v1148
        %1192 = vmatpush.bf16.msra.mxu0 %v1145
        %1193 = vmatpush.bf16.msra.mxu0 %v1142
        %1194 = vmatpush.bf16.msra.mxu0 %v1139
        %1195 = vmatpush.bf16.msra.mxu0 %v1136
        %1196 = vmatpush.bf16.msra.mxu0 %v1133
        %1197 = vmatpush.bf16.msra.mxu0 %v1130
        %1198 = vmatmul.bf16.gmra.mxu0 %v1008
        %v1199 = vpop.f32.mrf.mxu0
        %v1200 = vadd.f32 %v1044, %v1199
        %v1201 = vpop.f32.mrf.mxu0
        %1202 = vdwg.mxu0
        %1203 = vmatpush.bf16.msra.mxu0 %v1152
        %1204 = vmatpush.bf16.msra.mxu0 %v1149
        %1205 = vmatpush.bf16.msra.mxu0 %v1146
        %1206 = vmatpush.bf16.msra.mxu0 %v1143
        %1207 = vmatpush.bf16.msra.mxu0 %v1140
        %1208 = vmatpush.bf16.msra.mxu0 %v1137
        %1209 = vmatpush.bf16.msra.mxu0 %v1134
        %1210 = vmatpush.bf16.msra.mxu0 %v1131
        %1211 = vmatmul.bf16.gmra.mxu0 %v1008
        %v1212 = vpop.f32.mrf.mxu0
        %v1213 = vadd.f32 %v1045, %v1212
        %v1214 = vpop.f32.mrf.mxu0
        %1215 = vdwg.mxu0
        %v1216 = vmul.f32 %v1187, 0.17677669
        %1218 = vrot.lane.b32.xlu0 %v1216, 96
        %v1219 = vpop.permute.xlu0 %1218
        %1221 = vrot.lane.b32.xlu0 %v1216, 64
        %v1222 = vpop.permute.xlu0 %1221
        %1224 = vrot.lane.b32.xlu0 %v1216, 32
        %v1225 = vpop.permute.xlu0 %1224
        %v1227 = vpack.c.bf16 %v1216, %v1216
        %v1228 = vpack.c.bf16 %v1219, %v1219
        %v1229 = vpack.c.bf16 %v1222, %v1222
        %v1230 = vpack.c.bf16 %v1225, %v1225
        %1232 = vrot.lane.b32.xlu0 %v1200, 96
        %v1233 = vpop.permute.xlu0 %1232
        %1235 = vrot.lane.b32.xlu0 %v1200, 64
        %v1236 = vpop.permute.xlu0 %1235
        %1238 = vrot.lane.b32.xlu0 %v1200, 32
        %v1239 = vpop.permute.xlu0 %1238
        %v1241 = vpack.c.bf16 %v1200, %v1200
        %v1242 = vpack.c.bf16 %v1233, %v1233
        %v1243 = vpack.c.bf16 %v1236, %v1236
        %v1244 = vpack.c.bf16 %v1239, %v1239
        %1246 = vrot.lane.b32.xlu0 %v1213, 96
        %v1247 = vpop.permute.xlu0 %1246
        %1249 = vrot.lane.b32.xlu0 %v1213, 64
        %v1250 = vpop.permute.xlu0 %1249
        %1252 = vrot.lane.b32.xlu0 %v1213, 32
        %v1253 = vpop.permute.xlu0 %1252
        %v1255 = vpack.c.bf16 %v1213, %v1213
        %v1256 = vpack.c.bf16 %v1247, %v1247
        %v1257 = vpack.c.bf16 %v1250, %v1250
        %v1258 = vpack.c.bf16 %v1253, %v1253
        %v1259 = vld [vmem:[%s762] sm:$0x1]
        %v1261 = vperm.slane %v1259, 0
        %vm1263 = vcmask 261120
        %v1265 = vsel %vm1263, %v1227, 0
        %v1268 = vsel %vm1263, %v1241, 0
        %1270 = vmatpush.bf16.xpose.msra.mxu0 0
        %1271 = vmatpush.bf16.xpose.msra.mxu0 0
        %1272 = vmatpush.bf16.xpose.msra.mxu0 0
        %1273 = vmatpush.bf16.xpose.msra.mxu0 0
        %1274 = vmatpush.bf16.xpose.msra.mxu0 0
        %1275 = vmatpush.bf16.xpose.msra.mxu0 0
        %1276 = vmatpush.bf16.xpose.msra.mxu0 0
        %1277 = vmatpush.bf16.xpose.msra.mxu0 %v1268
        %1278 = vmatmul.bf16.gmra.mxu0 %v1265
        %v1279 = vpop.f32.mrf.mxu0
        %v1280 = vadd.f32 %v1261, %v1279
        %v1281 = vpop.f32.mrf.mxu0
        %1282 = vdwg.mxu0
        %v1284 = vsel %vm1263, %v1228, 0
        %v1287 = vsel %vm1263, %v1242, 0
        %1289 = vmatpush.bf16.xpose.msra.mxu0 0
        %1290 = vmatpush.bf16.xpose.msra.mxu0 0
        %1291 = vmatpush.bf16.xpose.msra.mxu0 0
        %1292 = vmatpush.bf16.xpose.msra.mxu0 0
        %1293 = vmatpush.bf16.xpose.msra.mxu0 0
        %1294 = vmatpush.bf16.xpose.msra.mxu0 0
        %1295 = vmatpush.bf16.xpose.msra.mxu0 0
        %1296 = vmatpush.bf16.xpose.msra.mxu0 %v1287
        %1297 = vmatmul.bf16.gmra.mxu0 %v1284
        %v1298 = vpop.f32.mrf.mxu0
        %v1299 = vadd.f32 %v1261, %v1298
        %v1300 = vpop.f32.mrf.mxu0
        %1301 = vdwg.mxu0
        %v1303 = vsel %vm1263, %v1229, 0
        %v1306 = vsel %vm1263, %v1243, 0
        %1308 = vmatpush.bf16.xpose.msra.mxu0 0
        %1309 = vmatpush.bf16.xpose.msra.mxu0 0
        %1310 = vmatpush.bf16.xpose.msra.mxu0 0
        %1311 = vmatpush.bf16.xpose.msra.mxu0 0
        %1312 = vmatpush.bf16.xpose.msra.mxu0 0
        %1313 = vmatpush.bf16.xpose.msra.mxu0 0
        %1314 = vmatpush.bf16.xpose.msra.mxu0 0
        %1315 = vmatpush.bf16.xpose.msra.mxu0 %v1306
        %1316 = vmatmul.bf16.gmra.mxu0 %v1303
        %v1317 = vpop.f32.mrf.mxu0
        %v1318 = vadd.f32 %v1261, %v1317
        %v1319 = vpop.f32.mrf.mxu0
        %1320 = vdwg.mxu0
        %v1322 = vsel %vm1263, %v1230, 0
        %v1325 = vsel %vm1263, %v1244, 0
        %1327 = vmatpush.bf16.xpose.msra.mxu0 0
        %1328 = vmatpush.bf16.xpose.msra.mxu0 0
        %1329 = vmatpush.bf16.xpose.msra.mxu0 0
        %1330 = vmatpush.bf16.xpose.msra.mxu0 0
        %1331 = vmatpush.bf16.xpose.msra.mxu0 0
        %1332 = vmatpush.bf16.xpose.msra.mxu0 0
        %1333 = vmatpush.bf16.xpose.msra.mxu0 0
        %1334 = vmatpush.bf16.xpose.msra.mxu0 %v1325
        %1335 = vmatmul.bf16.gmra.mxu0 %v1322
        %v1336 = vpop.f32.mrf.mxu0
        %v1337 = vadd.f32 %v1261, %v1336
        %v1338 = vpop.f32.mrf.mxu0
        %1339 = vdwg.mxu0
        %vm1340 = vcmask 64512
        %v1341 = vsel %vm1340, %v1280, -inf
        %1342 = vmax.xlane.f32.xlu0 %v1341
        %v1343 = vpop.xlane.xlu0 %1342
        %v1344 = vsel %vm1340, %v1299, -inf
        %1345 = vmax.xlane.f32.xlu0 %v1344
        %v1346 = vpop.xlane.xlu0 %1345
        %v1347 = vsel %vm1340, %v1318, -inf
        %1348 = vmax.xlane.f32.xlu0 %v1347
        %v1349 = vpop.xlane.xlu0 %1348
        %v1350 = vsel %vm1340, %v1337, -inf
        %1351 = vmax.xlane.f32.xlu0 %v1350
        %v1352 = vpop.xlane.xlu0 %1351
        %v1353 = vsub.f32 %v1280, %v1343
        %v1354 = vsub.f32 %v1299, %v1346
        %v1355 = vsub.f32 %v1318, %v1349
        %v1356 = vsub.f32 %v1337, %v1352
        %v1357 = vmul.f32 %v1353, 1.442695
        %v1358 = vpow.pop %v1357
        %v1359 = vmul.f32 %v1354, 1.442695
        %v1360 = vpow.pop %v1359
        %v1361 = vmul.f32 %v1355, 1.442695
        %v1362 = vpow.pop %v1361
        %v1363 = vmul.f32 %v1356, 1.442695
        %v1364 = vpow.pop %v1363
        %v1365 = vsel %vm1340, %v1358, 0.0
        %1366 = vadd.xlane.f32.xlu0 %v1365
        %v1367 = vpop.xlane.xlu0 %1366
        %v1368 = vsel %vm1340, %v1360, 0.0
        %1369 = vadd.xlane.f32.xlu0 %v1368
        %v1370 = vpop.xlane.xlu0 %1369
        %v1371 = vsel %vm1340, %v1362, 0.0
        %1372 = vadd.xlane.f32.xlu0 %v1371
        %v1373 = vpop.xlane.xlu0 %1372
        %v1374 = vsel %vm1340, %v1364, 0.0
        %1375 = vadd.xlane.f32.xlu0 %v1374
        %v1376 = vpop.xlane.xlu0 %1375
        %v1377 = vrcp.pop %v1367
        %v1378 = vrcp.pop %v1370
        %v1379 = vrcp.pop %v1373
        %v1380 = vrcp.pop %v1376
        %v1381 = vmul.f32 %v1358, %v1377
        %v1382 = vmul.f32 %v1360, %v1378
        %v1383 = vmul.f32 %v1362, %v1379
        %v1384 = vmul.f32 %v1364, %v1380
        %v1385 = vpack.c.bf16 %v1381, %v1381
        %v1386 = vpack.c.bf16 %v1382, %v1382
        %v1387 = vpack.c.bf16 %v1383, %v1383
        %v1388 = vpack.c.bf16 %v1384, %v1384
        %v1390 = vsel %vm1340, %v1385, 0
        %vm1392 = vcmask 1043456
        %v1394 = vsel %vm1392, %v1255, 0
        %1396 = vmatpush.bf16.msra.mxu0 0
        %1397 = vmatpush.bf16.msra.mxu0 0
        %1398 = vmatpush.bf16.msra.mxu0 0
        %1399 = vmatpush.bf16.msra.mxu0 0
        %1400 = vmatpush.bf16.msra.mxu0 0
        %1401 = vmatpush.bf16.msra.mxu0 0
        %1402 = vmatpush.bf16.msra.mxu0 0
        %1403 = vmatpush.bf16.msra.mxu0 %v1394
        %1404 = vmatmul.bf16.gmra.mxu0 %v1390
        %v1405 = vpop.f32.mrf.mxu0
        %v1406 = vadd.f32 0.0, %v1405
        %v1407 = vpop.f32.mrf.mxu0
        %1408 = vdwg.mxu0
        %v1410 = vsel %vm1340, %v1386, 0
        %v1413 = vsel %vm1392, %v1256, 0
        %1415 = vmatpush.bf16.msra.mxu0 0
        %1416 = vmatpush.bf16.msra.mxu0 0
        %1417 = vmatpush.bf16.msra.mxu0 0
        %1418 = vmatpush.bf16.msra.mxu0 0
        %1419 = vmatpush.bf16.msra.mxu0 0
        %1420 = vmatpush.bf16.msra.mxu0 0
        %1421 = vmatpush.bf16.msra.mxu0 0
        %1422 = vmatpush.bf16.msra.mxu0 %v1413
        %1423 = vmatmul.bf16.gmra.mxu0 %v1410
        %v1424 = vpop.f32.mrf.mxu0
        %v1425 = vadd.f32 0.0, %v1424
        %v1426 = vpop.f32.mrf.mxu0
        %1427 = vdwg.mxu0
        %v1429 = vsel %vm1340, %v1387, 0
        %v1432 = vsel %vm1392, %v1257, 0
        %1434 = vmatpush.bf16.msra.mxu0 0
        %1435 = vmatpush.bf16.msra.mxu0 0
        %1436 = vmatpush.bf16.msra.mxu0 0
        %1437 = vmatpush.bf16.msra.mxu0 0
        %1438 = vmatpush.bf16.msra.mxu0 0
        %1439 = vmatpush.bf16.msra.mxu0 0
        %1440 = vmatpush.bf16.msra.mxu0 0
        %1441 = vmatpush.bf16.msra.mxu0 %v1432
        %1442 = vmatmul.bf16.gmra.mxu0 %v1429
        %v1443 = vpop.f32.mrf.mxu0
        %v1444 = vadd.f32 0.0, %v1443
        %v1445 = vpop.f32.mrf.mxu0
        %1446 = vdwg.mxu0
        %v1448 = vsel %vm1340, %v1388, 0
        %v1451 = vsel %vm1392, %v1258, 0
        %1453 = vmatpush.bf16.msra.mxu0 0
        %1454 = vmatpush.bf16.msra.mxu0 0
        %1455 = vmatpush.bf16.msra.mxu0 0
        %1456 = vmatpush.bf16.msra.mxu0 0
        %1457 = vmatpush.bf16.msra.mxu0 0
        %1458 = vmatpush.bf16.msra.mxu0 0
        %1459 = vmatpush.bf16.msra.mxu0 0
        %1460 = vmatpush.bf16.msra.mxu0 %v1451
        %1461 = vmatmul.bf16.gmra.mxu0 %v1448
        %v1462 = vpop.f32.mrf.mxu0
        %v1463 = vadd.f32 0.0, %v1462
        %v1464 = vpop.f32.mrf.mxu0
        %1465 = vdwg.mxu0
        %1467 = vrot.lane.b32.xlu0 %v1425, 32
        %v1468 = vpop.permute.xlu0 %1467
        %1471 = vrot.lane.b32.xlu0 %v1444, 64
        %v1472 = vpop.permute.xlu0 %1471
        %1475 = vrot.lane.b32.xlu0 %v1463, 96
        %v1476 = vpop.permute.xlu0 %1475
        %v1478 = vsel %vm1263, %v1406, %v1468
        %vm1479 = vcmask 523264
        %v1480 = vsel %vm1479, %v1478, %v1472
        %vm1481 = vcmask 785408
        %v1482 = vsel %vm1481, %v1480, %v1476
        %v1483 = vpack.c.bf16 %v1482, %v1482
        %v1484 = vld [vmem:[%s801] sm:$0xf]
        %v1485 = vld [vmem:[%s801 + $0x4] sm:$0xf]
        %v1486 = vld [vmem:[%s801 + $0x8] sm:$0xf]
        %v1487 = vld [vmem:[%s801 + $0xc] sm:$0xf]
        %v1488 = vld [vmem:[%s801 + $0x10] sm:$0xf]
        %v1489 = vld [vmem:[%s801 + $0x14] sm:$0xf]
        %v1490 = vld [vmem:[%s801 + $0x18] sm:$0xf]
        %v1491 = vld [vmem:[%s801 + $0x1c] sm:$0xf]
        %v1492 = vld [vmem:[%s801 + $0x20] sm:$0xf]
        %v1493 = vld [vmem:[%s801 + $0x24] sm:$0xf]
        %v1494 = vld [vmem:[%s801 + $0x28] sm:$0xf]
        %v1495 = vld [vmem:[%s801 + $0x2c] sm:$0xf]
        %v1496 = vld [vmem:[%s801 + $0x30] sm:$0xf]
        %v1497 = vld [vmem:[%s801 + $0x34] sm:$0xf]
        %v1498 = vld [vmem:[%s801 + $0x38] sm:$0xf]
        %v1499 = vld [vmem:[%s801 + $0x3c] sm:$0xf]
        %v1500 = vld [vmem:[%s810] sm:$0x1]
        %v1502 = vperm.slane %v1500, 0
        %v1520 = vunpack.c.l.b16 %v1484
        %v1521 = vunpack.c.l.b16 %v1485
        %v1522 = vunpack.c.l.b16 %v1486
        %v1523 = vunpack.c.l.b16 %v1487
        %v1524 = vunpack.c.l.b16 %v1488
        %v1525 = vunpack.c.l.b16 %v1489
        %v1526 = vunpack.c.l.b16 %v1490
        %v1527 = vunpack.c.l.b16 %v1491
        %v1528 = vunpack.c.l.b16 %v1492
        %v1529 = vunpack.c.l.b16 %v1493
        %v1530 = vunpack.c.l.b16 %v1494
        %v1531 = vunpack.c.l.b16 %v1495
        %v1532 = vunpack.c.l.b16 %v1496
        %v1533 = vunpack.c.l.b16 %v1497
        %v1534 = vunpack.c.l.b16 %v1498
        %v1535 = vunpack.c.l.b16 %v1499
        %v1536 = vpack.c.b16 %v1521, %v1520
        %v1537 = vpack.c.b16 %v1523, %v1522
        %v1538 = vpack.c.b16 %v1525, %v1524
        %v1539 = vpack.c.b16 %v1527, %v1526
        %v1540 = vpack.c.b16 %v1529, %v1528
        %v1541 = vpack.c.b16 %v1531, %v1530
        %v1542 = vpack.c.b16 %v1533, %v1532
        %v1543 = vpack.c.b16 %v1535, %v1534
        %1552 = vmatpush.bf16.msra.mxu0 %v1543
        %1553 = vmatpush.bf16.msra.mxu0 %v1542
        %1554 = vmatpush.bf16.msra.mxu0 %v1541
        %1555 = vmatpush.bf16.msra.mxu0 %v1540
        %1556 = vmatpush.bf16.msra.mxu0 %v1539
        %1557 = vmatpush.bf16.msra.mxu0 %v1538
        %1558 = vmatpush.bf16.msra.mxu0 %v1537
        %1559 = vmatpush.bf16.msra.mxu0 %v1536
        %1560 = vmatmul.bf16.gmra.mxu0 %v1483
        %v1561 = vpop.f32.mrf.mxu0
        %v1562 = vadd.f32 %v1502, %v1561
        %v1563 = vpop.f32.mrf.mxu0
        %1564 = vdwg.mxu0
        %v1565 = vadd.f32 %v970, %v1562
        %v1566 = vld [vmem:[%s819] sm:$0x1]
        %v1567 = vld [vmem:[%s828] sm:$0x1]
        %1568 = vadd.xlane.f32.xlu0 %v1565
        %v1569 = vpop.xlane.xlu0 %1568
        %v1570 = vmul.f32 %v1569, %v981
        %v1571 = vsub.f32 %v1565, %v1570
        %v1572 = vmul.f32 %v1571, %v1571
        %1573 = vadd.xlane.f32.xlu0 %v1572
        %v1574 = vpop.xlane.xlu0 %1573
        %v1575 = vmul.f32 %v1574, %v981
        %v1576 = vadd.f32 %v1575, 1e-05
        %v1577 = vrsqrt.pop %v1576
        %v1578 = vmul.f32 %v1577, %v1576
        %v1579 = vmul.f32 %v1578, %v1577
        %v1580 = vmul.f32 0.5, %v1579
        %v1581 = vsub.f32 1.5, %v1580
        %v1582 = vmul.f32 %v1577, %v1581
        %vm1583 = vweird.f32 %v1576
        %vm1584 = vweird.f32 %v1577
        %vm1585 = vmor %vm1583, %vm1584
        %v1586 = vsel %vm1585, %v1577, %v1582
        %v1587 = vmul.f32 %v1571, %v1586
        %v1589 = vperm.slane %v1566, 0
        %v1591 = vmul.f32 %v1587, %v1589
        %v1593 = vperm.slane %v1567, 0
        %v1595 = vadd.f32 %v1591, %v1593
        %v1596 = vpack.c.bf16 %v1595, %v1595
        %v1597 = vld [vmem:[%s838] sm:$0xff]
        %v1598 = vld [vmem:[%s838 + $0x8] sm:$0xff]
        %v1599 = vld [vmem:[%s838 + $0x10] sm:$0xff]
        %v1600 = vld [vmem:[%s838 + $0x18] sm:$0xff]
        %v1601 = vld [vmem:[%s838 + $0x20] sm:$0xff]
        %v1602 = vld [vmem:[%s838 + $0x28] sm:$0xff]
        %v1603 = vld [vmem:[%s838 + $0x30] sm:$0xff]
        %v1604 = vld [vmem:[%s838 + $0x38] sm:$0xff]
        %v1605 = vld [vmem:[%s838 + $0x40] sm:$0xff]
        %v1606 = vld [vmem:[%s838 + $0x48] sm:$0xff]
        %v1607 = vld [vmem:[%s838 + $0x50] sm:$0xff]
        %v1608 = vld [vmem:[%s838 + $0x58] sm:$0xff]
        %v1609 = vld [vmem:[%s838 + $0x60] sm:$0xff]
        %v1610 = vld [vmem:[%s838 + $0x68] sm:$0xff]
        %v1611 = vld [vmem:[%s838 + $0x70] sm:$0xff]
        %v1612 = vld [vmem:[%s838 + $0x78] sm:$0xff]
        %v1613 = vld [vmem:[%s838 + $0x80] sm:$0xff]
        %v1614 = vld [vmem:[%s838 + $0x88] sm:$0xff]
        %v1615 = vld [vmem:[%s838 + $0x90] sm:$0xff]
        %v1616 = vld [vmem:[%s838 + $0x98] sm:$0xff]
        %v1617 = vld [vmem:[%s838 + $0xa0] sm:$0xff]
        %v1618 = vld [vmem:[%s838 + $0xa8] sm:$0xff]
        %v1619 = vld [vmem:[%s838 + $0xb0] sm:$0xff]
        %v1620 = vld [vmem:[%s838 + $0xb8] sm:$0xff]
        %v1621 = vld [vmem:[%s838 + $0xc0] sm:$0xff]
        %v1622 = vld [vmem:[%s838 + $0xc8] sm:$0xff]
        %v1623 = vld [vmem:[%s838 + $0xd0] sm:$0xff]
        %v1624 = vld [vmem:[%s838 + $0xd8] sm:$0xff]
        %v1625 = vld [vmem:[%s838 + $0xe0] sm:$0xff]
        %v1626 = vld [vmem:[%s838 + $0xe8] sm:$0xff]
        %v1627 = vld [vmem:[%s838 + $0xf0] sm:$0xff]
        %v1628 = vld [vmem:[%s838 + $0xf8] sm:$0xff]
        %v1629 = vld [vmem:[%s959] sm:$0xf]
        %v1631 = vperm.slane %v1629, 0
        %v1632 = vperm.slane %v1629, 1
        %v1633 = vperm.slane %v1629, 2
        %v1634 = vperm.slane %v1629, 3
        %v1671 = vunpack.c.l.b16 %v1597
        %v1672 = vunpack.c.h.b16 %v1597
        %v1673 = vunpack.c.l.b16 %v1598
        %v1674 = vunpack.c.h.b16 %v1598
        %v1675 = vunpack.c.l.b16 %v1599
        %v1676 = vunpack.c.h.b16 %v1599
        %v1677 = vunpack.c.l.b16 %v1600
        %v1678 = vunpack.c.h.b16 %v1600
        %v1679 = vunpack.c.l.b16 %v1601
        %v1680 = vunpack.c.h.b16 %v1601
        %v1681 = vunpack.c.l.b16 %v1602
        %v1682 = vunpack.c.h.b16 %v1602
        %v1683 = vunpack.c.l.b16 %v1603
        %v1684 = vunpack.c.h.b16 %v1603
        %v1685 = vunpack.c.l.b16 %v1604
        %v1686 = vunpack.c.h.b16 %v1604
        %v1687 = vunpack.c.l.b16 %v1605
        %v1688 = vunpack.c.h.b16 %v1605
        %v1689 = vunpack.c.l.b16 %v1606
        %v1690 = vunpack.c.h.b16 %v1606
        %v1691 = vunpack.c.l.b16 %v1607
        %v1692 = vunpack.c.h.b16 %v1607
        %v1693 = vunpack.c.l.b16 %v1608
        %v1694 = vunpack.c.h.b16 %v1608
        %v1695 = vunpack.c.l.b16 %v1609
        %v1696 = vunpack.c.h.b16 %v1609
        %v1697 = vunpack.c.l.b16 %v1610
        %v1698 = vunpack.c.h.b16 %v1610
        %v1699 = vunpack.c.l.b16 %v1611
        %v1700 = vunpack.c.h.b16 %v1611
        %v1701 = vunpack.c.l.b16 %v1612
        %v1702 = vunpack.c.h.b16 %v1612
        %v1703 = vunpack.c.l.b16 %v1613
        %v1704 = vunpack.c.h.b16 %v1613
        %v1705 = vunpack.c.l.b16 %v1614
        %v1706 = vunpack.c.h.b16 %v1614
        %v1707 = vunpack.c.l.b16 %v1615
        %v1708 = vunpack.c.h.b16 %v1615
        %v1709 = vunpack.c.l.b16 %v1616
        %v1710 = vunpack.c.h.b16 %v1616
        %v1711 = vunpack.c.l.b16 %v1617
        %v1712 = vunpack.c.h.b16 %v1617
        %v1713 = vunpack.c.l.b16 %v1618
        %v1714 = vunpack.c.h.b16 %v1618
        %v1715 = vunpack.c.l.b16 %v1619
        %v1716 = vunpack.c.h.b16 %v1619
        %v1717 = vunpack.c.l.b16 %v1620
        %v1718 = vunpack.c.h.b16 %v1620
        %v1719 = vunpack.c.l.b16 %v1621
        %v1720 = vunpack.c.h.b16 %v1621
        %v1721 = vunpack.c.l.b16 %v1622
        %v1722 = vunpack.c.h.b16 %v1622
        %v1723 = vunpack.c.l.b16 %v1623
        %v1724 = vunpack.c.h.b16 %v1623
        %v1725 = vunpack.c.l.b16 %v1624
        %v1726 = vunpack.c.h.b16 %v1624
        %v1727 = vunpack.c.l.b16 %v1625
        %v1728 = vunpack.c.h.b16 %v1625
        %v1729 = vunpack.c.l.b16 %v1626
        %v1730 = vunpack.c.h.b16 %v1626
        %v1731 = vunpack.c.l.b16 %v1627
        %v1732 = vunpack.c.h.b16 %v1627
        %v1733 = vunpack.c.l.b16 %v1628
        %v1734 = vunpack.c.h.b16 %v1628
        %v1735 = vpack.c.b16 %v1675, %v1671
        %v1736 = vpack.c.b16 %v1676, %v1672
        %v1737 = vpack.c.b16 %v1677, %v1673
        %v1738 = vpack.c.b16 %v1678, %v1674
        %v1739 = vpack.c.b16 %v1683, %v1679
        %v1740 = vpack.c.b16 %v1684, %v1680
        %v1741 = vpack.c.b16 %v1685, %v1681
        %v1742 = vpack.c.b16 %v1686, %v1682
        %v1743 = vpack.c.b16 %v1691, %v1687
        %v1744 = vpack.c.b16 %v1692, %v1688
        %v1745 = vpack.c.b16 %v1693, %v1689
        %v1746 = vpack.c.b16 %v1694, %v1690
        %v1747 = vpack.c.b16 %v1699, %v1695
        %v1748 = vpack.c.b16 %v1700, %v1696
        %v1749 = vpack.c.b16 %v1701, %v1697
        %v1750 = vpack.c.b16 %v1702, %v1698
        %v1751 = vpack.c.b16 %v1707, %v1703
        %v1752 = vpack.c.b16 %v1708, %v1704
        %v1753 = vpack.c.b16 %v1709, %v1705
        %v1754 = vpack.c.b16 %v1710, %v1706
        %v1755 = vpack.c.b16 %v1715, %v1711
        %v1756 = vpack.c.b16 %v1716, %v1712
        %v1757 = vpack.c.b16 %v1717, %v1713
        %v1758 = vpack.c.b16 %v1718, %v1714
        %v1759 = vpack.c.b16 %v1723, %v1719
        %v1760 = vpack.c.b16 %v1724, %v1720
        %v1761 = vpack.c.b16 %v1725, %v1721
        %v1762 = vpack.c.b16 %v1726, %v1722
        %v1763 = vpack.c.b16 %v1731, %v1727
        %v1764 = vpack.c.b16 %v1732, %v1728
        %v1765 = vpack.c.b16 %v1733, %v1729
        %v1766 = vpack.c.b16 %v1734, %v1730
        %1799 = vmatpush.bf16.msra.mxu0 %v1763
        %1800 = vmatpush.bf16.msra.mxu0 %v1759
        %1801 = vmatpush.bf16.msra.mxu0 %v1755
        %1802 = vmatpush.bf16.msra.mxu0 %v1751
        %1803 = vmatpush.bf16.msra.mxu0 %v1747
        %1804 = vmatpush.bf16.msra.mxu0 %v1743
        %1805 = vmatpush.bf16.msra.mxu0 %v1739
        %1806 = vmatpush.bf16.msra.mxu0 %v1735
        %1807 = vmatmul.bf16.gmra.mxu0 %v1596
        %v1808 = vpop.f32.mrf.mxu0
        %v1809 = vadd.f32 %v1631, %v1808
        %v1810 = vpop.f32.mrf.mxu0
        %1811 = vdwg.mxu0
        %1812 = vmatpush.bf16.msra.mxu0 %v1764
        %1813 = vmatpush.bf16.msra.mxu0 %v1760
        %1814 = vmatpush.bf16.msra.mxu0 %v1756
        %1815 = vmatpush.bf16.msra.mxu0 %v1752
        %1816 = vmatpush.bf16.msra.mxu0 %v1748
        %1817 = vmatpush.bf16.msra.mxu0 %v1744
        %1818 = vmatpush.bf16.msra.mxu0 %v1740
        %1819 = vmatpush.bf16.msra.mxu0 %v1736
        %1820 = vmatmul.bf16.gmra.mxu0 %v1596
        %v1821 = vpop.f32.mrf.mxu0
        %v1822 = vadd.f32 %v1632, %v1821
        %v1823 = vpop.f32.mrf.mxu0
        %1824 = vdwg.mxu0
        %1825 = vmatpush.bf16.msra.mxu0 %v1765
        %1826 = vmatpush.bf16.msra.mxu0 %v1761
        %1827 = vmatpush.bf16.msra.mxu0 %v1757
        %1828 = vmatpush.bf16.msra.mxu0 %v1753
        %1829 = vmatpush.bf16.msra.mxu0 %v1749
        %1830 = vmatpush.bf16.msra.mxu0 %v1745
        %1831 = vmatpush.bf16.msra.mxu0 %v1741
        %1832 = vmatpush.bf16.msra.mxu0 %v1737
        %1833 = vmatmul.bf16.gmra.mxu0 %v1596
        %v1834 = vpop.f32.mrf.mxu0
        %v1835 = vadd.f32 %v1633, %v1834
        %v1836 = vpop.f32.mrf.mxu0
        %1837 = vdwg.mxu0
        %1838 = vmatpush.bf16.msra.mxu0 %v1766
        %1839 = vmatpush.bf16.msra.mxu0 %v1762
        %1840 = vmatpush.bf16.msra.mxu0 %v1758
        %1841 = vmatpush.bf16.msra.mxu0 %v1754
        %1842 = vmatpush.bf16.msra.mxu0 %v1750
        %1843 = vmatpush.bf16.msra.mxu0 %v1746
        %1844 = vmatpush.bf16.msra.mxu0 %v1742
        %1845 = vmatpush.bf16.msra.mxu0 %v1738
        %1846 = vmatmul.bf16.gmra.mxu0 %v1596
        %v1847 = vpop.f32.mrf.mxu0
        %v1848 = vadd.f32 %v1634, %v1847
        %v1849 = vpop.f32.mrf.mxu0
        %1850 = vdwg.mxu0
        %v1851 = vmul.f32 %v1809, 0.5
        %v1852 = vmul.f32 %v1822, 0.5
        %v1853 = vmul.f32 %v1835, 0.5
        %v1854 = vmul.f32 %v1848, 0.5
        %v1855 = vmul.f32 %v1809, 0.70710677
        %v1856 = vmul.f32 %v1822, 0.70710677
        %v1857 = vmul.f32 %v1835, 0.70710677
        %v1858 = vmul.f32 %v1848, 0.70710677
        %v1859 = vand.u32 2147483647, %v1855
        %v1860 = vand.u32 2147483647, %v1856
        %v1861 = vand.u32 2147483647, %v1857
        %v1862 = vand.u32 2147483647, %v1858
        %v1863 = vmul.f32 %v1859, 0.3275911
        %v1864 = vmul.f32 %v1860, 0.3275911
        %v1865 = vmul.f32 %v1861, 0.3275911
        %v1866 = vmul.f32 %v1862, 0.3275911
        %v1867 = vadd.f32 %v1863, 1.0
        %v1868 = vadd.f32 %v1864, 1.0
        %v1869 = vadd.f32 %v1865, 1.0
        %v1870 = vadd.f32 %v1866, 1.0
        %v1871 = vrcp.pop %v1867
        %v1872 = vmul.f32 %v1867, %v1871
        %v1873 = vsub.f32 1.0, %v1872
        %v1874 = vmul.f32 %v1871, %v1873
        %v1875 = vadd.f32 %v1871, %v1874
        %vm1876 = vweird.f32 %v1867
        %vm1877 = vweird.f32 %v1871
        %vm1878 = vmor %vm1876, %vm1877
        %v1879 = vsel %vm1878, %v1871, %v1875
        %v1880 = vand.u32 2147483647, %v1867
        %vm1881 = vcmp.eq.f32.partialorder %v1880, 8.507059e+37
        %v1882 = vand.u32 %v1867, 2147483648
        %v1883 = vor.u32 1.1754944e-38, %v1882
        %v1884 = vsel %vm1881, %v1883, %v1879
        %v1885 = vmul.f32 1.0, %v1884
        %v1886 = vrcp.pop %v1868
        %v1887 = vmul.f32 %v1868, %v1886
        %v1888 = vsub.f32 1.0, %v1887
        %v1889 = vmul.f32 %v1886, %v1888
        %v1890 = vadd.f32 %v1886, %v1889
        %vm1891 = vweird.f32 %v1868
        %vm1892 = vweird.f32 %v1886
        %vm1893 = vmor %vm1891, %vm1892
        %v1894 = vsel %vm1893, %v1886, %v1890
        %v1895 = vand.u32 2147483647, %v1868
        %vm1896 = vcmp.eq.f32.partialorder %v1895, 8.507059e+37
        %v1897 = vand.u32 %v1868, 2147483648
        %v1898 = vor.u32 1.1754944e-38, %v1897
        %v1899 = vsel %vm1896, %v1898, %v1894
        %v1900 = vmul.f32 1.0, %v1899
        %v1901 = vrcp.pop %v1869
        %v1902 = vmul.f32 %v1869, %v1901
        %v1903 = vsub.f32 1.0, %v1902
        %v1904 = vmul.f32 %v1901, %v1903
        %v1905 = vadd.f32 %v1901, %v1904
        %vm1906 = vweird.f32 %v1869
        %vm1907 = vweird.f32 %v1901
        %vm1908 = vmor %vm1906, %vm1907
        %v1909 = vsel %vm1908, %v1901, %v1905
        %v1910 = vand.u32 2147483647, %v1869
        %vm1911 = vcmp.eq.f32.partialorder %v1910, 8.507059e+37
        %v1912 = vand.u32 %v1869, 2147483648
        %v1913 = vor.u32 1.1754944e-38, %v1912
        %v1914 = vsel %vm1911, %v1913, %v1909
        %v1915 = vmul.f32 1.0, %v1914
        %v1916 = vrcp.pop %v1870
        %v1917 = vmul.f32 %v1870, %v1916
        %v1918 = vsub.f32 1.0, %v1917
        %v1919 = vmul.f32 %v1916, %v1918
        %v1920 = vadd.f32 %v1916, %v1919
        %vm1921 = vweird.f32 %v1870
        %vm1922 = vweird.f32 %v1916
        %vm1923 = vmor %vm1921, %vm1922
        %v1924 = vsel %vm1923, %v1916, %v1920
        %v1925 = vand.u32 2147483647, %v1870
        %vm1926 = vcmp.eq.f32.partialorder %v1925, 8.507059e+37
        %v1927 = vand.u32 %v1870, 2147483648
        %v1928 = vor.u32 1.1754944e-38, %v1927
        %v1929 = vsel %vm1926, %v1928, %v1924
        %v1930 = vmul.f32 1.0, %v1929
        %v1931 = vmul.f32 %v1885, 1.0614054
        %v1932 = vmul.f32 %v1900, 1.0614054
        %v1933 = vmul.f32 %v1915, 1.0614054
        %v1934 = vmul.f32 %v1930, 1.0614054
        %v1935 = vadd.f32 %v1931, -1.4531521
        %v1936 = vadd.f32 %v1932, -1.4531521
        %v1937 = vadd.f32 %v1933, -1.4531521
        %v1938 = vadd.f32 %v1934, -1.4531521
        %v1939 = vmul.f32 %v1935, %v1885
        %v1940 = vmul.f32 %v1936, %v1900
        %v1941 = vmul.f32 %v1937, %v1915
        %v1942 = vmul.f32 %v1938, %v1930
        %v1943 = vadd.f32 %v1939, 1.4214138
        %v1944 = vadd.f32 %v1940, 1.4214138
        %v1945 = vadd.f32 %v1941, 1.4214138
        %v1946 = vadd.f32 %v1942, 1.4214138
        %v1947 = vmul.f32 %v1943, %v1885
        %v1948 = vmul.f32 %v1944, %v1900
        %v1949 = vmul.f32 %v1945, %v1915
        %v1950 = vmul.f32 %v1946, %v1930
        %v1951 = vadd.f32 %v1947, -0.28449672
        %v1952 = vadd.f32 %v1948, -0.28449672
        %v1953 = vadd.f32 %v1949, -0.28449672
        %v1954 = vadd.f32 %v1950, -0.28449672
        %v1955 = vmul.f32 %v1951, %v1885
        %v1956 = vmul.f32 %v1952, %v1900
        %v1957 = vmul.f32 %v1953, %v1915
        %v1958 = vmul.f32 %v1954, %v1930
        %v1959 = vadd.f32 %v1955, 0.2548296
        %v1960 = vadd.f32 %v1956, 0.2548296
        %v1961 = vadd.f32 %v1957, 0.2548296
        %v1962 = vadd.f32 %v1958, 0.2548296
        %v1963 = vmul.f32 %v1959, %v1885
        %v1964 = vmul.f32 %v1960, %v1900
        %v1965 = vmul.f32 %v1961, %v1915
        %v1966 = vmul.f32 %v1962, %v1930
        %v1967 = vmul.f32 %v1859, %v1859
        %v1968 = vmul.f32 %v1860, %v1860
        %v1969 = vmul.f32 %v1861, %v1861
        %v1970 = vmul.f32 %v1862, %v1862
        %v1971 = vsub.f32 0.0, %v1967
        %v1972 = vsub.f32 0.0, %v1968
        %v1973 = vsub.f32 0.0, %v1969
        %v1974 = vsub.f32 0.0, %v1970
        %v1975 = vmul.f32 %v1971, 1.442695
        %v1976 = vpow.pop %v1975
        %v1977 = vmul.f32 %v1972, 1.442695
        %v1978 = vpow.pop %v1977
        %v1979 = vmul.f32 %v1973, 1.442695
        %v1980 = vpow.pop %v1979
        %v1981 = vmul.f32 %v1974, 1.442695
        %v1982 = vpow.pop %v1981
        %v1983 = vmul.f32 %v1963, %v1976
        %v1984 = vmul.f32 %v1964, %v1978
        %v1985 = vmul.f32 %v1965, %v1980
        %v1986 = vmul.f32 %v1966, %v1982
        %v1987 = vsub.f32 1.0, %v1983
        %v1988 = vsub.f32 1.0, %v1984
        %v1989 = vsub.f32 1.0, %v1985
        %v1990 = vsub.f32 1.0, %v1986
        %vm1991 = vcmp.ge.f32.partialorder %v1855, 0.0
        %vm1992 = vcmp.ge.f32.partialorder %v1856, 0.0
        %vm1993 = vcmp.ge.f32.partialorder %v1857, 0.0
        %vm1994 = vcmp.ge.f32.partialorder %v1858, 0.0
        %v1995 = vsub.f32 0.0, %v1987
        %v1996 = vsub.f32 0.0, %v1988
        %v1997 = vsub.f32 0.0, %v1989
        %v1998 = vsub.f32 0.0, %v1990
        %v1999 = vsel %vm1991, %v1987, %v1995
        %v2000 = vsel %vm1992, %v1988, %v1996
        %v2001 = vsel %vm1993, %v1989, %v1997
        %v2002 = vsel %vm1994, %v1990, %v1998
        %v2003 = vadd.f32 %v1999, 1.0
        %v2004 = vadd.f32 %v2000, 1.0
        %v2005 = vadd.f32 %v2001, 1.0
        %v2006 = vadd.f32 %v2002, 1.0
        %v2007 = vmul.f32 %v1851, %v2003
        %v2008 = vmul.f32 %v1852, %v2004
        %v2009 = vmul.f32 %v1853, %v2005
        %v2010 = vmul.f32 %v1854, %v2006
        %v2011 = vpack.c.bf16 %v2007, %v2007
        %v2012 = vpack.c.bf16 %v2008, %v2008
        %v2013 = vpack.c.bf16 %v2009, %v2009
        %v2014 = vpack.c.bf16 %v2010, %v2010
        %v2015 = vld [vmem:[%s848] sm:$0xf]
        %v2016 = vld [vmem:[%s848 + $0x4] sm:$0xf]
        %v2017 = vld [vmem:[%s848 + $0x8] sm:$0xf]
        %v2018 = vld [vmem:[%s848 + $0xc] sm:$0xf]
        %v2019 = vld [vmem:[%s848 + $0x10] sm:$0xf]
        %v2020 = vld [vmem:[%s848 + $0x14] sm:$0xf]
        %v2021 = vld [vmem:[%s848 + $0x18] sm:$0xf]
        %v2022 = vld [vmem:[%s848 + $0x1c] sm:$0xf]
        %v2023 = vld [vmem:[%s848 + $0x20] sm:$0xf]
        %v2024 = vld [vmem:[%s848 + $0x24] sm:$0xf]
        %v2025 = vld [vmem:[%s848 + $0x28] sm:$0xf]
        %v2026 = vld [vmem:[%s848 + $0x2c] sm:$0xf]
        %v2027 = vld [vmem:[%s848 + $0x30] sm:$0xf]
        %v2028 = vld [vmem:[%s848 + $0x34] sm:$0xf]
        %v2029 = vld [vmem:[%s848 + $0x38] sm:$0xf]
        %v2030 = vld [vmem:[%s848 + $0x3c] sm:$0xf]
        %v2031 = vld [vmem:[%s848 + $0x40] sm:$0xf]
        %v2032 = vld [vmem:[%s848 + $0x44] sm:$0xf]
        %v2033 = vld [vmem:[%s848 + $0x48] sm:$0xf]
        %v2034 = vld [vmem:[%s848 + $0x4c] sm:$0xf]
        %v2035 = vld [vmem:[%s848 + $0x50] sm:$0xf]
        %v2036 = vld [vmem:[%s848 + $0x54] sm:$0xf]
        %v2037 = vld [vmem:[%s848 + $0x58] sm:$0xf]
        %v2038 = vld [vmem:[%s848 + $0x5c] sm:$0xf]
        %v2039 = vld [vmem:[%s848 + $0x60] sm:$0xf]
        %v2040 = vld [vmem:[%s848 + $0x64] sm:$0xf]
        %v2041 = vld [vmem:[%s848 + $0x68] sm:$0xf]
        %v2042 = vld [vmem:[%s848 + $0x6c] sm:$0xf]
        %v2043 = vld [vmem:[%s848 + $0x70] sm:$0xf]
        %v2044 = vld [vmem:[%s848 + $0x74] sm:$0xf]
        %v2045 = vld [vmem:[%s848 + $0x78] sm:$0xf]
        %v2046 = vld [vmem:[%s848 + $0x7c] sm:$0xf]
        %v2047 = vld [vmem:[%s848 + $0x80] sm:$0xf]
        %v2048 = vld [vmem:[%s848 + $0x84] sm:$0xf]
        %v2049 = vld [vmem:[%s848 + $0x88] sm:$0xf]
        %v2050 = vld [vmem:[%s848 + $0x8c] sm:$0xf]
        %v2051 = vld [vmem:[%s848 + $0x90] sm:$0xf]
        %v2052 = vld [vmem:[%s848 + $0x94] sm:$0xf]
        %v2053 = vld [vmem:[%s848 + $0x98] sm:$0xf]
        %v2054 = vld [vmem:[%s848 + $0x9c] sm:$0xf]
        %v2055 = vld [vmem:[%s848 + $0xa0] sm:$0xf]
        %v2056 = vld [vmem:[%s848 + $0xa4] sm:$0xf]
        %v2057 = vld [vmem:[%s848 + $0xa8] sm:$0xf]
        %v2058 = vld [vmem:[%s848 + $0xac] sm:$0xf]
        %v2059 = vld [vmem:[%s848 + $0xb0] sm:$0xf]
        %v2060 = vld [vmem:[%s848 + $0xb4] sm:$0xf]
        %v2061 = vld [vmem:[%s848 + $0xb8] sm:$0xf]
        %v2062 = vld [vmem:[%s848 + $0xbc] sm:$0xf]
        %v2063 = vld [vmem:[%s848 + $0xc0] sm:$0xf]
        %v2064 = vld [vmem:[%s848 + $0xc4] sm:$0xf]
        %v2065 = vld [vmem:[%s848 + $0xc8] sm:$0xf]
        %v2066 = vld [vmem:[%s848 + $0xcc] sm:$0xf]
        %v2067 = vld [vmem:[%s848 + $0xd0] sm:$0xf]
        %v2068 = vld [vmem:[%s848 + $0xd4] sm:$0xf]
        %v2069 = vld [vmem:[%s848 + $0xd8] sm:$0xf]
        %v2070 = vld [vmem:[%s848 + $0xdc] sm:$0xf]
        %v2071 = vld [vmem:[%s848 + $0xe0] sm:$0xf]
        %v2072 = vld [vmem:[%s848 + $0xe4] sm:$0xf]
        %v2073 = vld [vmem:[%s848 + $0xe8] sm:$0xf]
        %v2074 = vld [vmem:[%s848 + $0xec] sm:$0xf]
        %v2075 = vld [vmem:[%s848 + $0xf0] sm:$0xf]
        %v2076 = vld [vmem:[%s848 + $0xf4] sm:$0xf]
        %v2077 = vld [vmem:[%s848 + $0xf8] sm:$0xf]
        %v2078 = vld [vmem:[%s848 + $0xfc] sm:$0xf]
        %v2079 = vld [vmem:[%s962] sm:$0x1]
        %v2081 = vperm.slane %v2079, 0
        %v2147 = vunpack.c.l.b16 %v2015
        %v2148 = vunpack.c.l.b16 %v2016
        %v2149 = vunpack.c.l.b16 %v2017
        %v2150 = vunpack.c.l.b16 %v2018
        %v2151 = vunpack.c.l.b16 %v2019
        %v2152 = vunpack.c.l.b16 %v2020
        %v2153 = vunpack.c.l.b16 %v2021
        %v2154 = vunpack.c.l.b16 %v2022
        %v2155 = vunpack.c.l.b16 %v2023
        %v2156 = vunpack.c.l.b16 %v2024
        %v2157 = vunpack.c.l.b16 %v2025
        %v2158 = vunpack.c.l.b16 %v2026
        %v2159 = vunpack.c.l.b16 %v2027
        %v2160 = vunpack.c.l.b16 %v2028
        %v2161 = vunpack.c.l.b16 %v2029
        %v2162 = vunpack.c.l.b16 %v2030
        %v2163 = vunpack.c.l.b16 %v2031
        %v2164 = vunpack.c.l.b16 %v2032
        %v2165 = vunpack.c.l.b16 %v2033
        %v2166 = vunpack.c.l.b16 %v2034
        %v2167 = vunpack.c.l.b16 %v2035
        %v2168 = vunpack.c.l.b16 %v2036
        %v2169 = vunpack.c.l.b16 %v2037
        %v2170 = vunpack.c.l.b16 %v2038
        %v2171 = vunpack.c.l.b16 %v2039
        %v2172 = vunpack.c.l.b16 %v2040
        %v2173 = vunpack.c.l.b16 %v2041
        %v2174 = vunpack.c.l.b16 %v2042
        %v2175 = vunpack.c.l.b16 %v2043
        %v2176 = vunpack.c.l.b16 %v2044
        %v2177 = vunpack.c.l.b16 %v2045
        %v2178 = vunpack.c.l.b16 %v2046
        %v2179 = vunpack.c.l.b16 %v2047
        %v2180 = vunpack.c.l.b16 %v2048
        %v2181 = vunpack.c.l.b16 %v2049
        %v2182 = vunpack.c.l.b16 %v2050
        %v2183 = vunpack.c.l.b16 %v2051
        %v2184 = vunpack.c.l.b16 %v2052
        %v2185 = vunpack.c.l.b16 %v2053
        %v2186 = vunpack.c.l.b16 %v2054
        %v2187 = vunpack.c.l.b16 %v2055
        %v2188 = vunpack.c.l.b16 %v2056
        %v2189 = vunpack.c.l.b16 %v2057
        %v2190 = vunpack.c.l.b16 %v2058
        %v2191 = vunpack.c.l.b16 %v2059
        %v2192 = vunpack.c.l.b16 %v2060
        %v2193 = vunpack.c.l.b16 %v2061
        %v2194 = vunpack.c.l.b16 %v2062
        %v2195 = vunpack.c.l.b16 %v2063
        %v2196 = vunpack.c.l.b16 %v2064
        %v2197 = vunpack.c.l.b16 %v2065
        %v2198 = vunpack.c.l.b16 %v2066
        %v2199 = vunpack.c.l.b16 %v2067
        %v2200 = vunpack.c.l.b16 %v2068
        %v2201 = vunpack.c.l.b16 %v2069
        %v2202 = vunpack.c.l.b16 %v2070
        %v2203 = vunpack.c.l.b16 %v2071
        %v2204 = vunpack.c.l.b16 %v2072
        %v2205 = vunpack.c.l.b16 %v2073
        %v2206 = vunpack.c.l.b16 %v2074
        %v2207 = vunpack.c.l.b16 %v2075
        %v2208 = vunpack.c.l.b16 %v2076
        %v2209 = vunpack.c.l.b16 %v2077
        %v2210 = vunpack.c.l.b16 %v2078
        %v2211 = vpack.c.b16 %v2148, %v2147
        %v2212 = vpack.c.b16 %v2150, %v2149
        %v2213 = vpack.c.b16 %v2152, %v2151
        %v2214 = vpack.c.b16 %v2154, %v2153
        %v2215 = vpack.c.b16 %v2156, %v2155
        %v2216 = vpack.c.b16 %v2158, %v2157
        %v2217 = vpack.c.b16 %v2160, %v2159
        %v2218 = vpack.c.b16 %v2162, %v2161
        %v2219 = vpack.c.b16 %v2164, %v2163
        %v2220 = vpack.c.b16 %v2166, %v2165
        %v2221 = vpack.c.b16 %v2168, %v2167
        %v2222 = vpack.c.b16 %v2170, %v2169
        %v2223 = vpack.c.b16 %v2172, %v2171
        %v2224 = vpack.c.b16 %v2174, %v2173
        %v2225 = vpack.c.b16 %v2176, %v2175
        %v2226 = vpack.c.b16 %v2178, %v2177
        %v2227 = vpack.c.b16 %v2180, %v2179
        %v2228 = vpack.c.b16 %v2182, %v2181
        %v2229 = vpack.c.b16 %v2184, %v2183
        %v2230 = vpack.c.b16 %v2186, %v2185
        %v2231 = vpack.c.b16 %v2188, %v2187
        %v2232 = vpack.c.b16 %v2190, %v2189
        %v2233 = vpack.c.b16 %v2192, %v2191
        %v2234 = vpack.c.b16 %v2194, %v2193
        %v2235 = vpack.c.b16 %v2196, %v2195
        %v2236 = vpack.c.b16 %v2198, %v2197
        %v2237 = vpack.c.b16 %v2200, %v2199
        %v2238 = vpack.c.b16 %v2202, %v2201
        %v2239 = vpack.c.b16 %v2204, %v2203
        %v2240 = vpack.c.b16 %v2206, %v2205
        %v2241 = vpack.c.b16 %v2208, %v2207
        %v2242 = vpack.c.b16 %v2210, %v2209
        %2275 = vmatpush.bf16.msra.mxu0 %v2218
        %2276 = vmatpush.bf16.msra.mxu0 %v2217
        %2277 = vmatpush.bf16.msra.mxu0 %v2216
        %2278 = vmatpush.bf16.msra.mxu0 %v2215
        %2279 = vmatpush.bf16.msra.mxu0 %v2214
        %2280 = vmatpush.bf16.msra.mxu0 %v2213
        %2281 = vmatpush.bf16.msra.mxu0 %v2212
        %2282 = vmatpush.bf16.msra.mxu0 %v2211
        %2283 = vmatmul.bf16.gmra.mxu0 %v2011
        %v2284 = vpop.f32.mrf.mxu0
        %v2285 = vadd.f32 %v2081, %v2284
        %v2286 = vpop.f32.mrf.mxu0
        %2287 = vdwg.mxu0
        %2288 = vmatpush.bf16.msra.mxu0 %v2226
        %2289 = vmatpush.bf16.msra.mxu0 %v2225
        %2290 = vmatpush.bf16.msra.mxu0 %v2224
        %2291 = vmatpush.bf16.msra.mxu0 %v2223
        %2292 = vmatpush.bf16.msra.mxu0 %v2222
        %2293 = vmatpush.bf16.msra.mxu0 %v2221
        %2294 = vmatpush.bf16.msra.mxu0 %v2220
        %2295 = vmatpush.bf16.msra.mxu0 %v2219
        %2296 = vmatmul.bf16.gmra.mxu0 %v2012
        %v2297 = vpop.f32.mrf.mxu0
        %v2298 = vadd.f32 %v2285, %v2297
        %v2299 = vpop.f32.mrf.mxu0
        %2300 = vdwg.mxu0
        %2301 = vmatpush.bf16.msra.mxu0 %v2234
        %2302 = vmatpush.bf16.msra.mxu0 %v2233
        %2303 = vmatpush.bf16.msra.mxu0 %v2232
        %2304 = vmatpush.bf16.msra.mxu0 %v2231
        %2305 = vmatpush.bf16.msra.mxu0 %v2230
        %2306 = vmatpush.bf16.msra.mxu0 %v2229
        %2307 = vmatpush.bf16.msra.mxu0 %v2228
        %2308 = vmatpush.bf16.msra.mxu0 %v2227
        %2309 = vmatmul.bf16.gmra.mxu0 %v2013
        %v2310 = vpop.f32.mrf.mxu0
        %v2311 = vadd.f32 %v2298, %v2310
        %v2312 = vpop.f32.mrf.mxu0
        %2313 = vdwg.mxu0
        %2314 = vmatpush.bf16.msra.mxu0 %v2242
        %2315 = vmatpush.bf16.msra.mxu0 %v2241
        %2316 = vmatpush.bf16.msra.mxu0 %v2240
        %2317 = vmatpush.bf16.msra.mxu0 %v2239
        %2318 = vmatpush.bf16.msra.mxu0 %v2238
        %2319 = vmatpush.bf16.msra.mxu0 %v2237
        %2320 = vmatpush.bf16.msra.mxu0 %v2236
        %2321 = vmatpush.bf16.msra.mxu0 %v2235
        %2322 = vmatmul.bf16.gmra.mxu0 %v2014
        %v2323 = vpop.f32.mrf.mxu0
        %v2324 = vadd.f32 %v2311, %v2323
        %v2325 = vpop.f32.mrf.mxu0
        %2326 = vdwg.mxu0
        %v2327 = vadd.f32 %v1565, %v2324
        %p2328 = scmp.lt.s32.totalorder %s53, 1
        // Predicated region
        $region133: #{tpu_custom_call.1} parent=83 // pred_check
          %p2329 = pneg %p2328
        $region134: #{tpu_custom_call.1} parent=83 // pred_check_branch
          %2331 = sbr.rel (%p2329) target = $region136
        $region135: #{tpu_custom_call.1} parent=83 // pred_region
          %2332 = vst [vmem:[%s952] sm:$0xff] %v2327
        $region136: #{tpu_custom_call.1} parent=83 // pred_fallthru
          _
        %p2333 = scmp.eq.s32.totalorder %s53, 1
        // Predicated region
        $region137: #{tpu_custom_call.1} parent=83 // pred_check
          %p2334 = pneg %p2333
        $region138: #{tpu_custom_call.1} parent=83 // pred_check_branch
          %2336 = sbr.rel (%p2334) target = $region140
        $region139: #{tpu_custom_call.1} parent=83 // pred_region
          %v2337 = vld [vmem:[%s14] sm:$0x1]
          %v2338 = vld [vmem:[%s15] sm:$0x1]
          %2339 = vadd.xlane.f32.xlu0 %v2327
          %v2340 = vpop.xlane.xlu0 %2339
          %v2341 = vmul.f32 %v2340, %v981
          %v2342 = vsub.f32 %v2327, %v2341
          %v2343 = vmul.f32 %v2342, %v2342
          %2344 = vadd.xlane.f32.xlu0 %v2343
          %v2345 = vpop.xlane.xlu0 %2344
          %v2346 = vmul.f32 %v2345, %v981
          %v2347 = vadd.f32 %v2346, 1e-05
          %v2348 = vrsqrt.pop %v2347
          %v2349 = vmul.f32 %v2348, %v2347
          %v2350 = vmul.f32 %v2349, %v2348
          %v2351 = vmul.f32 0.5, %v2350
          %v2352 = vsub.f32 1.5, %v2351
          %v2353 = vmul.f32 %v2348, %v2352
          %vm2354 = vweird.f32 %v2347
          %vm2355 = vweird.f32 %v2348
          %vm2356 = vmor %vm2354, %vm2355
          %v2357 = vsel %vm2356, %v2348, %v2353
          %v2358 = vmul.f32 %v2342, %v2357
          %v2360 = vperm.slane %v2337, 0
          %v2362 = vmul.f32 %v2358, %v2360
          %v2364 = vperm.slane %v2338, 0
          %v2366 = vadd.f32 %v2362, %v2364
          %2367 = vst [vmem:[%s952] sm:$0xff] %v2366
        $region140: #{tpu_custom_call.1} parent=83 // pred_fallthru
          _
        %s2368 = sand.u32 %s474, 1
        %s2369 = scalar_lea.sflag [#allocation4], %s2368
        %s2370 = sand.u32 %s474, 1
        %s2371 = smul.addr %s2370, 8
        %s2372 = scalar_lea.vmem [#allocation20], %s2371
        // Predicated region
        $region141: #{tpu_custom_call.1} parent=83 // pred_check
          %p2373 = pneg %p484
        $region142: #{tpu_custom_call.1} parent=83 // pred_check_branch
          %2375 = sbr.rel (%p2373) target = $region144
        $region143: #{tpu_custom_call.1} parent=83 // pred_region
          %2377 = vsyncadd %s2369, 0
          %s2378 = smul.addr %s52, 8
          %s2379 = scalar_lea.hbm %s16, %s2378
          %s2381 = sshll.u32 %s2372, 4
          %s2382 = int_to_ptr.vmem [resolvable:$true] %s2381
          %s2383 = sshll.u32 %s2379, 4
          %s2384 = int_to_ptr.hbm [resolvable:$true] %s2383
          %2386 = dma.vmem_to_hbm [thread:$0]  %s2382, 128, %s2384, %s2369
        $region144: #{tpu_custom_call.1} parent=83 // pred_fallthru
          _
      $region84: #{tpu_custom_call.1} parent=5 // pred_fallthru
        _
      %p2387 = scmp.le.s32.totalorder 2, %s43
      // Predicated region
      $region145: #{tpu_custom_call.1} parent=5 // pred_check
        %p2388 = pneg %p2387
      $region146: #{tpu_custom_call.1} parent=5 // pred_check_branch
        %2390 = sbr.rel (%p2388) target = $region148
      $region147: #{tpu_custom_call.1} parent=5 // pred_region
        %s2391 = ssub.s32 %s43, 2
        // Predicated region
        $region149: #{tpu_custom_call.1} parent=147 // pred_check
          %p2392 = pneg %p490
        $region150: #{tpu_custom_call.1} parent=147 // pred_check_branch
          %2394 = sbr.rel (%p2392) target = $region152
        $region151: #{tpu_custom_call.1} parent=147 // pred_region
          %s2395 = sand.u32 %s475, 1
          %s2396 = scalar_lea.sflag [#allocation4], %s2395
          %s2397 = sand.u32 %s475, 1
          %s2398 = smul.addr %s2397, 8
          %s2399 = scalar_lea.vmem [#allocation20], %s2398
          %2401 = dma.done %s2396, 128
        $region152: #{tpu_custom_call.1} parent=147 // pred_fallthru
          _
      $region148: #{tpu_custom_call.1} parent=5 // pred_fallthru
        _
    $region6: #{tpu_custom_call.1} parent=1 // loop_footer
      %s47 = sadd.s32 1, %s43
    $region7: #{tpu_custom_call.1} parent=1 // loop_footer_branch
      %42 = sbr.rel target = $region3
    $region8: #{tpu_custom_call.1} parent=1 // loop_exit
      _
    %2402 = vsyncpa [#allocation3], 1
    %s2403 = scalar_lea.sflag [#allocation3], 1
    %2404 = vsyncpa %s2403, 1
    %2405 = vsyncpa [#allocation6], 1
    %s2406 = scalar_lea.sflag [#allocation6], 1
    %2407 = vsyncpa %s2406, 1
    %2408 = vsyncpa [#allocation9], 1
    %s2409 = scalar_lea.sflag [#allocation9], 1
    %2410 = vsyncpa %s2409, 1
    %2411 = vsyncpa [#allocation12], 1
    %s2412 = scalar_lea.sflag [#allocation12], 1
    %2413 = vsyncpa %s2412, 1
    %2414 = vsyncpa [#allocation15], 1
    %s2415 = scalar_lea.sflag [#allocation15], 1
    %2416 = vsyncpa %s2415, 1
    %2417 = vsyncpa [#allocation18], 1
    %s2418 = scalar_lea.sflag [#allocation18], 1
    %2419 = vsyncpa %s2418, 1
    %2420 = vsyncpa [#allocation4], 1
    %s2421 = scalar_lea.sflag [#allocation4], 1
    %2422 = vsyncpa %s2421, 1

</llo_original>
